<compile_context>
chip_gen: v7x
topology: tpu7x:2x2x1
jax: 0.10.0
libtpu: 0.0.40
codegen_flags: <defaults>
</compile_context>

<pallas_src>
import functools

import jax
import jax.numpy as jnp
from jax.experimental import pallas as pl
from jax.experimental.pallas import tpu as pltpu

LATENT_DIM = 10
_TB_MAX = 512          # max batch rows per grid step


def _cdiv(a, b):
    return -(-a // b)


def _round_up(n, m):
    return _cdiv(n, m) * m


def _autoencoder_kernel(
    x_ref,                               # VMEM (TB, input_dim) f32
    w1, b1, w2, b2, w3, b3,              # encoder layers 0..2 (bf16 W, f32 b)
    wf, bfu,                             # fused enc_w3 @ dec_w0 (bf16), fused bias (f32)
    wd1, bd1, wd2, bd2, wd3, bd3,        # decoder layers 1..3 (wd3/bd3 lane-padded)
    out_ref,                             # VMEM (TB, out_pad) f32
):
    f32 = jnp.float32
    bf16 = jnp.bfloat16

    h = x_ref[...].astype(bf16)
    # Encoder: in -> 512 -> 256 -> 128   (bias add + ReLU in f32, downcast fused)
    h = jnp.maximum(jnp.dot(h, w1[...], preferred_element_type=f32) + b1[...], 0.0).astype(bf16)
    h = jnp.maximum(jnp.dot(h, w2[...], preferred_element_type=f32) + b2[...], 0.0).astype(bf16)
    h = jnp.maximum(jnp.dot(h, w3[...], preferred_element_type=f32) + b3[...], 0.0).astype(bf16)
    # Fused bottleneck: (128 -> latent -> 128) collapsed to one 128x128 matmul,
    # task indicator already folded into bfu.
    h = jnp.maximum(jnp.dot(h, wf[...], preferred_element_type=f32) + bfu[...], 0.0).astype(bf16)
    # Decoder: 128 -> 256 -> 512 -> out_pad (lane-dense)
    h = jnp.maximum(jnp.dot(h, wd1[...], preferred_element_type=f32) + bd1[...], 0.0).astype(bf16)
    h = jnp.maximum(jnp.dot(h, wd2[...], preferred_element_type=f32) + bd2[...], 0.0).astype(bf16)
    out = jnp.dot(h, wd3[...], preferred_element_type=f32) + bd3[...]
    out_ref[...] = out.astype(out_ref.dtype)


def init_params(key, input_dim, latent_dim, output_dim):
    """Deterministic parameter init (f32), matching nn.Linear default init.
    Weights stored as [in, out]."""
    dims_enc = [(input_dim, 512), (512, 256), (256, 128), (128, latent_dim)]
    dims_dec = [(latent_dim + 1, 128), (128, 256), (256, 512), (512, output_dim)]
    params = {}
    keys = jax.random.split(key, 2 * (len(dims_enc) + len(dims_dec)))
    ki = 0
    for name, dims in (("enc", dims_enc), ("dec", dims_dec)):
        for i, (fan_in, fan_out) in enumerate(dims):
            bound = 1.0 / float(jnp.sqrt(fan_in))
            params[f"{name}_w{i}"] = jax.random.uniform(
                keys[ki], (fan_in, fan_out), jnp.float32, -bound, bound)
            params[f"{name}_b{i}"] = jax.random.uniform(
                keys[ki + 1], (1, fan_out), jnp.float32, -bound, bound)
            ki += 2
    return params


def prepare_params(params):
    """One-time prep: bf16 weights, enc_w3·dec_w0 fusion, lane-padded output."""
    latent = params["enc_w3"].shape[1]
    output_dim = params["dec_w3"].shape[1]
    out_pad = _round_up(output_dim, 128)

    p = {}
    # Encoder layers 0..2
    for i in range(3):
        p[f"enc_w{i}"] = params[f"enc_w{i}"].astype(jnp.bfloat16)
        p[f"enc_b{i}"] = params[f"enc_b{i}"].astype(jnp.float32)

    # Fuse the rank-10 bottleneck: z = h@enc_w3 + enc_b3; dec0 = z@dec_w0[:L] + ...
    #   => dec0_pre_bias = h @ (enc_w3 @ dec_w0[:L]) + (enc_b3 @ dec_w0[:L] + dec_b0)
    wz = params["dec_w0"][:latent, :].astype(jnp.float32)              # (L, 128)
    p["fuse_w"] = (params["enc_w3"].astype(jnp.float32) @ wz).astype(jnp.bfloat16)  # (128,128)
    p["fuse_b"] = (params["enc_b3"].astype(jnp.float32) @ wz
                   + params["dec_b0"].astype(jnp.float32))              # (1, 128)
    p["dec_w0t"] = params["dec_w0"][latent:latent + 1, :].astype(jnp.float32)  # task row

    # Decoder layers 1..2
    for i in (1, 2):
        p[f"dec_w{i}"] = params[f"dec_w{i}"].astype(jnp.bfloat16)
        p[f"dec_b{i}"] = params[f"dec_b{i}"].astype(jnp.float32)

    # Final layer: zero-pad to 128 output lanes (unmasked stores).
    pad = out_pad - output_dim
    p["dec_w3"] = jnp.pad(params["dec_w3"], ((0, 0), (0, pad))).astype(jnp.bfloat16)
    p["dec_b3"] = jnp.pad(params["dec_b3"], ((0, 0), (0, pad))).astype(jnp.float32)
    # Keep an unpadded copy so the wrapper can recover output_dim statically.
    p["dec_b3_unpadded"] = params["dec_b3"].astype(jnp.float32)
    return p


@functools.partial(jax.jit, static_argnames=("task",))
def autoencoder_forward(kparams, x, task):
    """x: [B, input_dim] float32. Returns [B, output_dim] float32."""
    B, input_dim = x.shape
    output_dim = kparams["dec_b3_unpadded"].shape[1]
    out_pad = kparams["dec_b3"].shape[1]

    # Task indicator folded into the fused bias at trace time (task is static).
    flag = 1.0 if task in ("add_numbers", "subtract_numbers") else 0.0
    bfused = kparams["fuse_b"] + flag * kparams["dec_w0t"]

    # Batch tiling: minimize padding waste; force >=2 grid steps (when B > 8)
    # so the "parallel" axis can shard across both TensorCores on v7x.
    n_steps = _cdiv(B, _TB_MAX)
    if n_steps < 2 and B > 8:
        n_steps = 2
    tb = _round_up(_cdiv(B, n_steps), 8)
    b_pad = tb * n_steps
    x_p = x if b_pad == B else jnp.pad(x, ((0, b_pad - B), (0, 0)))

    weights = (
        kparams["enc_w0"], kparams["enc_b0"],
        kparams["enc_w1"], kparams["enc_b1"],
        kparams["enc_w2"], kparams["enc_b2"],
        kparams["fuse_w"], bfused,
        kparams["dec_w1"], kparams["dec_b1"],
        kparams["dec_w2"], kparams["dec_b2"],
        kparams["dec_w3"], kparams["dec_b3"],
    )

    # Cost hint for XLA scheduling around the custom call.
    flops = 2 * b_pad * sum(
        int(w.shape[0]) * int(w.shape[1]) for w in weights if w.shape[0] > 1)
    bytes_accessed = (
        sum(int(w.size) * w.dtype.itemsize for w in weights)
        + int(x_p.size) * x_p.dtype.itemsize
        + b_pad * out_pad * 4)

    in_specs = [pl.BlockSpec((tb, input_dim), lambda i: (i, 0))]
    # Constant index_map -> weights/biases stay resident in VMEM across tiles.
    in_specs += [pl.BlockSpec(w.shape, lambda i: (0, 0)) for w in weights]

    out = pl.pallas_call(
        _autoencoder_kernel,
        out_shape=jax.ShapeDtypeStruct((b_pad, out_pad), jnp.float32),
        grid=(n_steps,),
        in_specs=in_specs,
        out_specs=pl.BlockSpec((tb, out_pad), lambda i: (i, 0)),
        compiler_params=pltpu.CompilerParams(
            dimension_semantics=("parallel",)),          # megacore split on v7x
        cost_estimate=pl.CostEstimate(
            flops=flops, transcendentals=0, bytes_accessed=int(bytes_accessed)),
    )(x_p, *weights)
    # Padded batch rows produce garbage and are sliced away here; never reduce
    # over `out` before this slice.
    return out[:B, :output_dim]


def _reference_forward_f32(params, x, task):
    """Pure-f32 pure-JAX reference matching the original PyTorch semantics."""
    h = x
    for i in range(3):
        h = jnp.maximum(h @ params[f"enc_w{i}"] + params[f"enc_b{i}"], 0.0)
    z = h @ params["enc_w3"] + params["enc_b3"]
    flag = 1.0 if task in ("add_numbers", "subtract_numbers") else 0.0
    ind = jnp.full((z.shape[0], 1), flag, dtype=z.dtype)
    h = jnp.concatenate([z, ind], axis=1)
    for i in range(3):
        h = jnp.maximum(h @ params[f"dec_w{i}"] + params[f"dec_b{i}"], 0.0)
    return h @ params["dec_w3"] + params["dec_b3"]


def _reference_forward_bf16(kparams, x, task):
    """Pure-JAX reference replaying the kernel's exact bf16-weight /
    f32-accumulate / fused-bottleneck math (tight-tolerance check)."""
    f32, bf16 = jnp.float32, jnp.bfloat16
    flag = 1.0 if task in ("add_numbers", "subtract_numbers") else 0.0
    bfused = kparams["fuse_b"] + flag * kparams["dec_w0t"]
    output_dim = kparams["dec_b3_unpadded"].shape[1]

    layers = (
        (kparams["enc_w0"], kparams["enc_b0"]),
        (kparams["enc_w1"], kparams["enc_b1"]),
        (kparams["enc_w2"], kparams["enc_b2"]),
        (kparams["fuse_w"], bfused),
        (kparams["dec_w1"], kparams["dec_b1"]),
        (kparams["dec_w2"], kparams["dec_b2"]),
    )
    h = x.astype(bf16)
    for w, b in layers:
        h = jnp.maximum(jnp.dot(h, w, preferred_element_type=f32) + b, 0.0).astype(bf16)
    out = jnp.dot(h, kparams["dec_w3"], preferred_element_type=f32) + kparams["dec_b3"]
    return out[:, :output_dim]


if __name__ == "__main__":
    key = jax.random.PRNGKey(0)
    kp, kx_small, kx_big = jax.random.split(key, 3)

    input_dim, output_dim = 32, 32
    raw_params = init_params(kp, input_dim, LATENT_DIM, output_dim)
    kparams = prepare_params(raw_params)

    # Small batch (spec-sized) and a multi-tile batch (exercises grid + padding).
    for batch, kx in ((2, kx_small), (300, kx_big)):
        x = jax.random.normal(kx, (batch, input_dim), dtype=jnp.float32)
        for task in ("add_numbers", "something_else"):
            out = autoencoder_forward(kparams, x, task)
            jax.block_until_ready(out)
            assert out.shape == (batch, output_dim)

            # Tight check vs a reference with identical bf16/fusion math.
            ref_bf = _reference_forward_bf16(kparams, x, task)
            err_bf = float(jnp.max(jnp.abs(out - ref_bf)))
            assert jnp.allclose(out, ref_bf, atol=2e-3, rtol=2e-3), (
                f"bf16-ref mismatch B={batch} task={task} max_abs_err={err_bf}")

            # Loose check vs the pure-f32 PyTorch-equivalent reference
            # (quantifies bf16-weight drift vs the original model).
            ref_f32 = _reference_forward_f32(raw_params, x, task)
            err_f32 = float(jnp.max(jnp.abs(out - ref_f32)))
            assert jnp.allclose(out, ref_f32, atol=1e-1, rtol=1e-1), (
                f"f32-ref mismatch B={batch} task={task} max_abs_err={err_f32}")

    print("KERNEL_OK")
</pallas_src>

<mosaic_0001>
module attributes {stable_mosaic.version = 11 : i64} {
  func.func @_autoencoder_kernel(%arg0: i32, %arg1: memref<8x32xf32, #tpu.memory_space<vmem>>, %arg2: memref<32x512xbf16, #tpu.memory_space<vmem>>, %arg3: memref<1x512xf32, #tpu.memory_space<vmem>>, %arg4: memref<512x256xbf16, #tpu.memory_space<vmem>>, %arg5: memref<1x256xf32, #tpu.memory_space<vmem>>, %arg6: memref<256x128xbf16, #tpu.memory_space<vmem>>, %arg7: memref<1x128xf32, #tpu.memory_space<vmem>>, %arg8: memref<128x128xbf16, #tpu.memory_space<vmem>>, %arg9: memref<1x128xf32, #tpu.memory_space<vmem>>, %arg10: memref<128x256xbf16, #tpu.memory_space<vmem>>, %arg11: memref<1x256xf32, #tpu.memory_space<vmem>>, %arg12: memref<256x512xbf16, #tpu.memory_space<vmem>>, %arg13: memref<1x512xf32, #tpu.memory_space<vmem>>, %arg14: memref<512x128xbf16, #tpu.memory_space<vmem>>, %arg15: memref<1x128xf32, #tpu.memory_space<vmem>>, %arg16: memref<8x128xf32, #tpu.memory_space<vmem>>) attributes {dimension_semantics = [#tpu.dimension_semantics<parallel>], iteration_bounds = array<i64: 1>, scalar_prefetch = 0 : i64, scratch_operands = 0 : i64, tpu.core_type = #tpu.core_type<tc>, window_params = [{transform_indices = @transform_0, window_bounds = array<i64: 8, 32>}, {pipeline_mode = #tpu.pipeline_mode<synchronous>, transform_indices = @transform_1, window_bounds = array<i64: 32, 512>}, {pipeline_mode = #tpu.pipeline_mode<synchronous>, transform_indices = @transform_2, window_bounds = array<i64: 1, 512>}, {pipeline_mode = #tpu.pipeline_mode<synchronous>, transform_indices = @transform_3, window_bounds = array<i64: 512, 256>}, {pipeline_mode = #tpu.pipeline_mode<synchronous>, transform_indices = @transform_4, window_bounds = array<i64: 1, 256>}, {pipeline_mode = #tpu.pipeline_mode<synchronous>, transform_indices = @transform_5, window_bounds = array<i64: 256, 128>}, {pipeline_mode = #tpu.pipeline_mode<synchronous>, transform_indices = @transform_6, window_bounds = array<i64: 1, 128>}, {pipeline_mode = #tpu.pipeline_mode<synchronous>, transform_indices = @transform_7, window_bounds = array<i64: 128, 128>}, {pipeline_mode = #tpu.pipeline_mode<synchronous>, transform_indices = @transform_8, window_bounds = array<i64: 1, 128>}, {pipeline_mode = #tpu.pipeline_mode<synchronous>, transform_indices = @transform_9, window_bounds = array<i64: 128, 256>}, {pipeline_mode = #tpu.pipeline_mode<synchronous>, transform_indices = @transform_10, window_bounds = array<i64: 1, 256>}, {pipeline_mode = #tpu.pipeline_mode<synchronous>, transform_indices = @transform_11, window_bounds = array<i64: 256, 512>}, {pipeline_mode = #tpu.pipeline_mode<synchronous>, transform_indices = @transform_12, window_bounds = array<i64: 1, 512>}, {pipeline_mode = #tpu.pipeline_mode<synchronous>, transform_indices = @transform_13, window_bounds = array<i64: 512, 128>}, {pipeline_mode = #tpu.pipeline_mode<synchronous>, transform_indices = @transform_14, window_bounds = array<i64: 1, 128>}, {transform_indices = @transform_15, window_bounds = array<i64: 8, 128>}]} {
    %c0 = arith.constant 0 : index
    %c0_0 = arith.constant 0 : index
    %0 = vector.load %arg1[%c0, %c0_0] : memref<8x32xf32, #tpu.memory_space<vmem>>, vector<8x32xf32>
    %1 = arith.truncf %0 : vector<8x32xf32> to vector<8x32xbf16>
    %c0_1 = arith.constant 0 : index
    %c0_2 = arith.constant 0 : index
    %2 = vector.load %arg2[%c0_1, %c0_2] : memref<32x512xbf16, #tpu.memory_space<vmem>>, vector<32x512xbf16>
    %cst = arith.constant dense<0.000000e+00> : vector<8x512xf32>
    %3 = tpu.matmul %1, %2, %cst {dimension_numbers = #tpu.dot_dimension_numbers<[1], [0], [0], [1], [0, 0, 1, 1], [], []>} : vector<8x32xbf16>, vector<32x512xbf16>, vector<8x512xf32> -> vector<8x512xf32>
    %c0_3 = arith.constant 0 : index
    %c0_4 = arith.constant 0 : index
    %4 = vector.load %arg3[%c0_3, %c0_4] : memref<1x512xf32, #tpu.memory_space<vmem>>, vector<1x512xf32>
    %5 = vector.broadcast %4 : vector<1x512xf32> to vector<8x512xf32>
    %6 = arith.addf %3, %5 : vector<8x512xf32>
    %cst_5 = arith.constant 0.000000e+00 : f32
    %7 = vector.broadcast %cst_5 : f32 to vector<8x512xf32>
    %8 = arith.maximumf %6, %7 : vector<8x512xf32>
    %9 = arith.truncf %8 : vector<8x512xf32> to vector<8x512xbf16>
    %c0_6 = arith.constant 0 : index
    %c0_7 = arith.constant 0 : index
    %10 = vector.load %arg4[%c0_6, %c0_7] : memref<512x256xbf16, #tpu.memory_space<vmem>>, vector<512x256xbf16>
    %cst_8 = arith.constant dense<0.000000e+00> : vector<8x256xf32>
    %11 = tpu.matmul %9, %10, %cst_8 {dimension_numbers = #tpu.dot_dimension_numbers<[1], [0], [0], [1], [0, 0, 1, 1], [], []>} : vector<8x512xbf16>, vector<512x256xbf16>, vector<8x256xf32> -> vector<8x256xf32>
    %c0_9 = arith.constant 0 : index
    %c0_10 = arith.constant 0 : index
    %12 = vector.load %arg5[%c0_9, %c0_10] : memref<1x256xf32, #tpu.memory_space<vmem>>, vector<1x256xf32>
    %13 = vector.broadcast %12 : vector<1x256xf32> to vector<8x256xf32>
    %14 = arith.addf %11, %13 : vector<8x256xf32>
    %cst_11 = arith.constant 0.000000e+00 : f32
    %15 = vector.broadcast %cst_11 : f32 to vector<8x256xf32>
    %16 = arith.maximumf %14, %15 : vector<8x256xf32>
    %17 = arith.truncf %16 : vector<8x256xf32> to vector<8x256xbf16>
    %c0_12 = arith.constant 0 : index
    %c0_13 = arith.constant 0 : index
    %18 = vector.load %arg6[%c0_12, %c0_13] : memref<256x128xbf16, #tpu.memory_space<vmem>>, vector<256x128xbf16>
    %cst_14 = arith.constant dense<0.000000e+00> : vector<8x128xf32>
    %19 = tpu.matmul %17, %18, %cst_14 {dimension_numbers = #tpu.dot_dimension_numbers<[1], [0], [0], [1], [0, 0, 1, 1], [], []>} : vector<8x256xbf16>, vector<256x128xbf16>, vector<8x128xf32> -> vector<8x128xf32>
    %c0_15 = arith.constant 0 : index
    %c0_16 = arith.constant 0 : index
    %20 = vector.load %arg7[%c0_15, %c0_16] : memref<1x128xf32, #tpu.memory_space<vmem>>, vector<1x128xf32>
    %21 = vector.broadcast %20 : vector<1x128xf32> to vector<8x128xf32>
    %22 = arith.addf %19, %21 : vector<8x128xf32>
    %cst_17 = arith.constant 0.000000e+00 : f32
    %23 = vector.broadcast %cst_17 : f32 to vector<8x128xf32>
    %24 = arith.maximumf %22, %23 : vector<8x128xf32>
    %25 = arith.truncf %24 : vector<8x128xf32> to vector<8x128xbf16>
    %c0_18 = arith.constant 0 : index
    %c0_19 = arith.constant 0 : index
    %26 = vector.load %arg8[%c0_18, %c0_19] : memref<128x128xbf16, #tpu.memory_space<vmem>>, vector<128x128xbf16>
    %cst_20 = arith.constant dense<0.000000e+00> : vector<8x128xf32>
    %27 = tpu.matmul %25, %26, %cst_20 {dimension_numbers = #tpu.dot_dimension_numbers<[1], [0], [0], [1], [0, 0, 1, 1], [], []>} : vector<8x128xbf16>, vector<128x128xbf16>, vector<8x128xf32> -> vector<8x128xf32>
    %c0_21 = arith.constant 0 : index
    %c0_22 = arith.constant 0 : index
    %28 = vector.load %arg9[%c0_21, %c0_22] : memref<1x128xf32, #tpu.memory_space<vmem>>, vector<1x128xf32>
    %29 = vector.broadcast %28 : vector<1x128xf32> to vector<8x128xf32>
    %30 = arith.addf %27, %29 : vector<8x128xf32>
    %cst_23 = arith.constant 0.000000e+00 : f32
    %31 = vector.broadcast %cst_23 : f32 to vector<8x128xf32>
    %32 = arith.maximumf %30, %31 : vector<8x128xf32>
    %33 = arith.truncf %32 : vector<8x128xf32> to vector<8x128xbf16>
    %c0_24 = arith.constant 0 : index
    %c0_25 = arith.constant 0 : index
    %34 = vector.load %arg10[%c0_24, %c0_25] : memref<128x256xbf16, #tpu.memory_space<vmem>>, vector<128x256xbf16>
    %cst_26 = arith.constant dense<0.000000e+00> : vector<8x256xf32>
    %35 = tpu.matmul %33, %34, %cst_26 {dimension_numbers = #tpu.dot_dimension_numbers<[1], [0], [0], [1], [0, 0, 1, 1], [], []>} : vector<8x128xbf16>, vector<128x256xbf16>, vector<8x256xf32> -> vector<8x256xf32>
    %c0_27 = arith.constant 0 : index
    %c0_28 = arith.constant 0 : index
    %36 = vector.load %arg11[%c0_27, %c0_28] : memref<1x256xf32, #tpu.memory_space<vmem>>, vector<1x256xf32>
    %37 = vector.broadcast %36 : vector<1x256xf32> to vector<8x256xf32>
    %38 = arith.addf %35, %37 : vector<8x256xf32>
    %cst_29 = arith.constant 0.000000e+00 : f32
    %39 = vector.broadcast %cst_29 : f32 to vector<8x256xf32>
    %40 = arith.maximumf %38, %39 : vector<8x256xf32>
    %41 = arith.truncf %40 : vector<8x256xf32> to vector<8x256xbf16>
    %c0_30 = arith.constant 0 : index
    %c0_31 = arith.constant 0 : index
    %42 = vector.load %arg12[%c0_30, %c0_31] : memref<256x512xbf16, #tpu.memory_space<vmem>>, vector<256x512xbf16>
    %cst_32 = arith.constant dense<0.000000e+00> : vector<8x512xf32>
    %43 = tpu.matmul %41, %42, %cst_32 {dimension_numbers = #tpu.dot_dimension_numbers<[1], [0], [0], [1], [0, 0, 1, 1], [], []>} : vector<8x256xbf16>, vector<256x512xbf16>, vector<8x512xf32> -> vector<8x512xf32>
    %c0_33 = arith.constant 0 : index
    %c0_34 = arith.constant 0 : index
    %44 = vector.load %arg13[%c0_33, %c0_34] : memref<1x512xf32, #tpu.memory_space<vmem>>, vector<1x512xf32>
    %45 = vector.broadcast %44 : vector<1x512xf32> to vector<8x512xf32>
    %46 = arith.addf %43, %45 : vector<8x512xf32>
    %cst_35 = arith.constant 0.000000e+00 : f32
    %47 = vector.broadcast %cst_35 : f32 to vector<8x512xf32>
    %48 = arith.maximumf %46, %47 : vector<8x512xf32>
    %49 = arith.truncf %48 : vector<8x512xf32> to vector<8x512xbf16>
    %c0_36 = arith.constant 0 : index
    %c0_37 = arith.constant 0 : index
    %50 = vector.load %arg14[%c0_36, %c0_37] : memref<512x128xbf16, #tpu.memory_space<vmem>>, vector<512x128xbf16>
    %cst_38 = arith.constant dense<0.000000e+00> : vector<8x128xf32>
    %51 = tpu.matmul %49, %50, %cst_38 {dimension_numbers = #tpu.dot_dimension_numbers<[1], [0], [0], [1], [0, 0, 1, 1], [], []>} : vector<8x512xbf16>, vector<512x128xbf16>, vector<8x128xf32> -> vector<8x128xf32>
    %c0_39 = arith.constant 0 : index
    %c0_40 = arith.constant 0 : index
    %52 = vector.load %arg15[%c0_39, %c0_40] : memref<1x128xf32, #tpu.memory_space<vmem>>, vector<1x128xf32>
    %53 = vector.broadcast %52 : vector<1x128xf32> to vector<8x128xf32>
    %54 = arith.addf %51, %53 : vector<8x128xf32>
    %c0_41 = arith.constant 0 : index
    %c0_42 = arith.constant 0 : index
    %55 = vector.load %arg16[%c0_41, %c0_42] : memref<8x128xf32, #tpu.memory_space<vmem>>, vector<8x128xf32>
    tpu.vector_store %arg16[%c0_41, %c0_42], %54 {strides = array<i32>} : memref<8x128xf32, #tpu.memory_space<vmem>>, vector<8x128xf32>,
    return
  }
  func.func @transform_0(%arg0: i32) -> (i32, i32) {
    %c0_i32 = arith.constant 0 : i32
    %c0_i32_0 = arith.constant 0 : i32
    return %arg0, %c0_i32 : i32, i32
  }
  func.func @transform_1(%arg0: i32) -> (i32, i32) {
    %c0_i32 = arith.constant 0 : i32
    %c0_i32_0 = arith.constant 0 : i32
    %c0_i32_1 = arith.constant 0 : i32
    return %c0_i32, %c0_i32_0 : i32, i32
  }
  func.func @transform_2(%arg0: i32) -> (i32, i32) {
    %c0_i32 = arith.constant 0 : i32
    %c0_i32_0 = arith.constant 0 : i32
    %c0_i32_1 = arith.constant 0 : i32
    return %c0_i32, %c0_i32_0 : i32, i32
  }
  func.func @transform_3(%arg0: i32) -> (i32, i32) {
    %c0_i32 = arith.constant 0 : i32
    %c0_i32_0 = arith.constant 0 : i32
    %c0_i32_1 = arith.constant 0 : i32
    return %c0_i32, %c0_i32_0 : i32, i32
  }
  func.func @transform_4(%arg0: i32) -> (i32, i32) {
    %c0_i32 = arith.constant 0 : i32
    %c0_i32_0 = arith.constant 0 : i32
    %c0_i32_1 = arith.constant 0 : i32
    return %c0_i32, %c0_i32_0 : i32, i32
  }
  func.func @transform_5(%arg0: i32) -> (i32, i32) {
    %c0_i32 = arith.constant 0 : i32
    %c0_i32_0 = arith.constant 0 : i32
    %c0_i32_1 = arith.constant 0 : i32
    return %c0_i32, %c0_i32_0 : i32, i32
  }
  func.func @transform_6(%arg0: i32) -> (i32, i32) {
    %c0_i32 = arith.constant 0 : i32
    %c0_i32_0 = arith.constant 0 : i32
    %c0_i32_1 = arith.constant 0 : i32
    return %c0_i32, %c0_i32_0 : i32, i32
  }
  func.func @transform_7(%arg0: i32) -> (i32, i32) {
    %c0_i32 = arith.constant 0 : i32
    %c0_i32_0 = arith.constant 0 : i32
    %c0_i32_1 = arith.constant 0 : i32
    return %c0_i32, %c0_i32_0 : i32, i32
  }
  func.func @transform_8(%arg0: i32) -> (i32, i32) {
    %c0_i32 = arith.constant 0 : i32
    %c0_i32_0 = arith.constant 0 : i32
    %c0_i32_1 = arith.constant 0 : i32
    return %c0_i32, %c0_i32_0 : i32, i32
  }
  func.func @transform_9(%arg0: i32) -> (i32, i32) {
    %c0_i32 = arith.constant 0 : i32
    %c0_i32_0 = arith.constant 0 : i32
    %c0_i32_1 = arith.constant 0 : i32
    return %c0_i32, %c0_i32_0 : i32, i32
  }
  func.func @transform_10(%arg0: i32) -> (i32, i32) {
    %c0_i32 = arith.constant 0 : i32
    %c0_i32_0 = arith.constant 0 : i32
    %c0_i32_1 = arith.constant 0 : i32
    return %c0_i32, %c0_i32_0 : i32, i32
  }
  func.func @transform_11(%arg0: i32) -> (i32, i32) {
    %c0_i32 = arith.constant 0 : i32
    %c0_i32_0 = arith.constant 0 : i32
    %c0_i32_1 = arith.constant 0 : i32
    return %c0_i32, %c0_i32_0 : i32, i32
  }
  func.func @transform_12(%arg0: i32) -> (i32, i32) {
    %c0_i32 = arith.constant 0 : i32
    %c0_i32_0 = arith.constant 0 : i32
    %c0_i32_1 = arith.constant 0 : i32
    return %c0_i32, %c0_i32_0 : i32, i32
  }
  func.func @transform_13(%arg0: i32) -> (i32, i32) {
    %c0_i32 = arith.constant 0 : i32
    %c0_i32_0 = arith.constant 0 : i32
    %c0_i32_1 = arith.constant 0 : i32
    return %c0_i32, %c0_i32_0 : i32, i32
  }
  func.func @transform_14(%arg0: i32) -> (i32, i32) {
    %c0_i32 = arith.constant 0 : i32
    %c0_i32_0 = arith.constant 0 : i32
    %c0_i32_1 = arith.constant 0 : i32
    return %c0_i32, %c0_i32_0 : i32, i32
  }
  func.func @transform_15(%arg0: i32) -> (i32, i32) {
    %c0_i32 = arith.constant 0 : i32
    %c0_i32_0 = arith.constant 0 : i32
    return %arg0, %c0_i32 : i32, i32
  }
}

</mosaic_0001>

<llo_original>
// kernel: autoencoder_forward.1
$region0: #{autoencoder_forward.1}
  #allocation0 [shape = 'u32[]', space=smem, size = 0x4, offset = 0x4, fixed_abs, tag = 'smem constant byte address 0x4 - core index']
  #allocation1 [shape = 'u32[144,128]{1,0:T(1,128)}', space=vmem, size = 0x12000, scoped, tag = 'internal scratch']
  %s0 = inlined_call_operand.vmem [shape: f32[8,32], index: 0, kind: input, shape index: {}]
  %s1 = inlined_call_operand.hbm [shape: bf16[32,512], index: 1, kind: input, shape index: {}]
  %s2 = inlined_call_operand.hbm [shape: f32[1,512], index: 2, kind: input, shape index: {}]
  %s3 = inlined_call_operand.hbm [shape: bf16[512,256], index: 3, kind: input, shape index: {}]
  %s4 = inlined_call_operand.vmem [shape: f32[1,256], index: 4, kind: input, shape index: {}]
  %s5 = inlined_call_operand.hbm [shape: bf16[256,128], index: 5, kind: input, shape index: {}]
  %s6 = inlined_call_operand.vmem [shape: f32[1,128], index: 6, kind: input, shape index: {}]
  %s7 = inlined_call_operand.vmem [shape: bf16[128,128], index: 7, kind: input, shape index: {}]
  %s8 = inlined_call_operand.vmem [shape: f32[1,128], index: 8, kind: input, shape index: {}]
  %s9 = inlined_call_operand.hbm [shape: bf16[128,256], index: 9, kind: input, shape index: {}]
  %s10 = inlined_call_operand.hbm [shape: f32[1,256], index: 10, kind: input, shape index: {}]
  %s11 = inlined_call_operand.hbm [shape: bf16[256,512], index: 11, kind: input, shape index: {}]
  %s12 = inlined_call_operand.hbm [shape: f32[1,512], index: 12, kind: input, shape index: {}]
  %s13 = inlined_call_operand.hbm [shape: bf16[512,128], index: 13, kind: input, shape index: {}]
  %s14 = inlined_call_operand.hbm [shape: f32[1,128], index: 14, kind: input, shape index: {}]
  %s15 = inlined_call_operand.vmem [shape: f32[8,128], index: 15, kind: output, shape index: {}]
  %s16 = sld [smem:[#allocation0]]
  $region110: #{autoencoder_forward.1} parent=0
    _
  %s18 = ssub.s32 1, %s16
  %s19 = scalar_select 0, %s18, %s16
  $region1: #{autoencoder_forward.1} parent=0
    #allocation2 [shape = 'u8[32768]{0}', space=vmem, size = 0x8000, scoped, tag = 'input window, operand 1, single buffered']
    #allocation3 [shape = 's32[1]{0}', space=sflag, size = 0x4, scoped, tag = 'scoped memory for autoencoder_forward.1']
    #allocation4 [shape = 'u8[2048]{0}', space=vmem, size = 0x800, scoped, tag = 'input window, operand 2, single buffered']
    #allocation5 [shape = 's32[1]{0}', space=sflag, size = 0x4, scoped, tag = 'scoped memory for autoencoder_forward.1']
    #allocation6 [shape = 'u8[262144]{0}', space=vmem, size = 0x40000, scoped, tag = 'input window, operand 3, single buffered']
    #allocation7 [shape = 'u8[65536]{0}', space=vmem, size = 0x10000, scoped, tag = 'input window, operand 5, single buffered']
    #allocation8 [shape = 's32[1]{0}', space=sflag, size = 0x4, scoped, tag = 'scoped memory for autoencoder_forward.1']
    #allocation9 [shape = 'u8[65536]{0}', space=vmem, size = 0x10000, scoped, tag = 'input window, operand 9, single buffered']
    #allocation10 [shape = 'u8[1024]{0}', space=vmem, size = 0x400, scoped, tag = 'input window, operand 10, single buffered']
    #allocation11 [shape = 's32[1]{0}', space=sflag, size = 0x4, scoped, tag = 'scoped memory for autoencoder_forward.1']
    #allocation12 [shape = 'u8[262144]{0}', space=vmem, size = 0x40000, scoped, tag = 'input window, operand 11, single buffered']
    #allocation13 [shape = 'u8[2048]{0}', space=vmem, size = 0x800, scoped, tag = 'input window, operand 12, single buffered']
    #allocation14 [shape = 's32[1]{0}', space=sflag, size = 0x4, scoped, tag = 'scoped memory for autoencoder_forward.1']
    #allocation15 [shape = 'u8[131072]{0}', space=vmem, size = 0x20000, scoped, tag = 'input window, operand 13, single buffered']
    #allocation16 [shape = 'u8[512]{0}', space=vmem, size = 0x400, scoped, tag = 'input window, operand 14, single buffered']
    #allocation17 [shape = 's32[1]{0}', space=sflag, size = 0x4, scoped, tag = 'scoped memory for autoencoder_forward.1']
    %20 = vsyncpa [#allocation3], 0
    %21 = vsyncpa [#allocation5], 0
    %22 = vsyncpa [#allocation8], 0
    %23 = vsyncpa [#allocation11], 0
    %24 = vsyncpa [#allocation14], 0
    %25 = vsyncpa [#allocation17], 0
    // Predicated region
    $region2: #{autoencoder_forward.1} parent=1 // pred_check
      _
    $region3: #{autoencoder_forward.1} parent=1 // pred_check_branch
      %27 = sbr.rel (0) target = $region5
    $region4: #{autoencoder_forward.1} parent=1 // pred_region
      _
    $region5: #{autoencoder_forward.1} parent=1 // pred_fallthru
      _
    // Predicated region
    $region6: #{autoencoder_forward.1} parent=1 // pred_check
      _
    $region7: #{autoencoder_forward.1} parent=1 // pred_check_branch
      %29 = sbr.rel (0) target = $region9
    $region8: #{autoencoder_forward.1} parent=1 // pred_region
      %s31 = ssub.s32 1024, 1024
      %32 = vsyncadd [#allocation3], %s31
      %s33 = sshll.u32 [#allocation2], 4
      %s34 = int_to_ptr.vmem [resolvable:$true] %s33
      %39 = dma.hbm_to_vmem [thread:$0]  %s1, 1024, %s34, [#allocation3], 256, 256, 16
    $region9: #{autoencoder_forward.1} parent=1 // pred_fallthru
      _
    // Predicated region
    $region10: #{autoencoder_forward.1} parent=1 // pred_check
      _
    $region11: #{autoencoder_forward.1} parent=1 // pred_check_branch
      %41 = sbr.rel (0) target = $region13
    $region12: #{autoencoder_forward.1} parent=1 // pred_region
      %s43 = ssub.s32 64, 64
      %44 = vsyncadd [#allocation5], %s43
      %s46 = sshll.u32 [#allocation4], 4
      %s47 = int_to_ptr.vmem [resolvable:$true] %s46
      %49 = dma.hbm_to_vmem [thread:$0]  %s2, 64, %s47, [#allocation5]
    $region13: #{autoencoder_forward.1} parent=1 // pred_fallthru
      _
    // Predicated region
    $region14: #{autoencoder_forward.1} parent=1 // pred_check
      _
    $region15: #{autoencoder_forward.1} parent=1 // pred_check_branch
      %51 = sbr.rel (0) target = $region17
    $region16: #{autoencoder_forward.1} parent=1 // pred_region
      %s53 = ssub.s32 8192, 8192
      %54 = vsyncadd [#allocation5], %s53
      %s55 = sshll.u32 [#allocation6], 4
      %s56 = int_to_ptr.vmem [resolvable:$true] %s55
      %61 = dma.hbm_to_vmem [thread:$0]  %s3, 8192, %s56, [#allocation5], 128, 128, 8
    $region17: #{autoencoder_forward.1} parent=1 // pred_fallthru
      _
    // Predicated region
    $region18: #{autoencoder_forward.1} parent=1 // pred_check
      _
    $region19: #{autoencoder_forward.1} parent=1 // pred_check_branch
      %63 = sbr.rel (0) target = $region21
    $region20: #{autoencoder_forward.1} parent=1 // pred_region
      _
    $region21: #{autoencoder_forward.1} parent=1 // pred_fallthru
      _
    // Predicated region
    $region22: #{autoencoder_forward.1} parent=1 // pred_check
      _
    $region23: #{autoencoder_forward.1} parent=1 // pred_check_branch
      %65 = sbr.rel (0) target = $region25
    $region24: #{autoencoder_forward.1} parent=1 // pred_region
      %s67 = ssub.s32 2048, 2048
      %68 = vsyncadd [#allocation8], %s67
      %s69 = sshll.u32 [#allocation7], 4
      %s70 = int_to_ptr.vmem [resolvable:$true] %s69
      %75 = dma.hbm_to_vmem [thread:$0]  %s5, 2048, %s70, [#allocation8], 64, 64, 4
    $region25: #{autoencoder_forward.1} parent=1 // pred_fallthru
      _
    // Predicated region
    $region26: #{autoencoder_forward.1} parent=1 // pred_check
      _
    $region27: #{autoencoder_forward.1} parent=1 // pred_check_branch
      %77 = sbr.rel (0) target = $region29
    $region28: #{autoencoder_forward.1} parent=1 // pred_region
      _
    $region29: #{autoencoder_forward.1} parent=1 // pred_fallthru
      _
    // Predicated region
    $region30: #{autoencoder_forward.1} parent=1 // pred_check
      _
    $region31: #{autoencoder_forward.1} parent=1 // pred_check_branch
      %79 = sbr.rel (0) target = $region33
    $region32: #{autoencoder_forward.1} parent=1 // pred_region
      _
    $region33: #{autoencoder_forward.1} parent=1 // pred_fallthru
      _
    // Predicated region
    $region34: #{autoencoder_forward.1} parent=1 // pred_check
      _
    $region35: #{autoencoder_forward.1} parent=1 // pred_check_branch
      %81 = sbr.rel (0) target = $region37
    $region36: #{autoencoder_forward.1} parent=1 // pred_region
      _
    $region37: #{autoencoder_forward.1} parent=1 // pred_fallthru
      _
    // Predicated region
    $region38: #{autoencoder_forward.1} parent=1 // pred_check
      _
    $region39: #{autoencoder_forward.1} parent=1 // pred_check_branch
      %83 = sbr.rel (0) target = $region41
    $region40: #{autoencoder_forward.1} parent=1 // pred_region
      %s85 = ssub.s32 2048, 2048
      %86 = vsyncadd [#allocation8], %s85
      %s87 = sshll.u32 [#allocation9], 4
      %s88 = int_to_ptr.vmem [resolvable:$true] %s87
      %93 = dma.hbm_to_vmem [thread:$0]  %s9, 2048, %s88, [#allocation8], 128, 128, 8
    $region41: #{autoencoder_forward.1} parent=1 // pred_fallthru
      _
    // Predicated region
    $region42: #{autoencoder_forward.1} parent=1 // pred_check
      _
    $region43: #{autoencoder_forward.1} parent=1 // pred_check_branch
      %95 = sbr.rel (0) target = $region45
    $region44: #{autoencoder_forward.1} parent=1 // pred_region
      %s97 = ssub.s32 32, 32
      %98 = vsyncadd [#allocation11], %s97
      %s100 = sshll.u32 [#allocation10], 4
      %s101 = int_to_ptr.vmem [resolvable:$true] %s100
      %103 = dma.hbm_to_vmem [thread:$0]  %s10, 32, %s101, [#allocation11]
    $region45: #{autoencoder_forward.1} parent=1 // pred_fallthru
      _
    // Predicated region
    $region46: #{autoencoder_forward.1} parent=1 // pred_check
      _
    $region47: #{autoencoder_forward.1} parent=1 // pred_check_branch
      %105 = sbr.rel (0) target = $region49
    $region48: #{autoencoder_forward.1} parent=1 // pred_region
      %s107 = ssub.s32 8192, 8192
      %108 = vsyncadd [#allocation11], %s107
      %s109 = sshll.u32 [#allocation12], 4
      %s110 = int_to_ptr.vmem [resolvable:$true] %s109
      %115 = dma.hbm_to_vmem [thread:$0]  %s11, 8192, %s110, [#allocation11], 256, 256, 16
    $region49: #{autoencoder_forward.1} parent=1 // pred_fallthru
      _
    // Predicated region
    $region50: #{autoencoder_forward.1} parent=1 // pred_check
      _
    $region51: #{autoencoder_forward.1} parent=1 // pred_check_branch
      %117 = sbr.rel (0) target = $region53
    $region52: #{autoencoder_forward.1} parent=1 // pred_region
      %s119 = ssub.s32 64, 64
      %120 = vsyncadd [#allocation14], %s119
      %s122 = sshll.u32 [#allocation13], 4
      %s123 = int_to_ptr.vmem [resolvable:$true] %s122
      %125 = dma.hbm_to_vmem [thread:$0]  %s12, 64, %s123, [#allocation14]
    $region53: #{autoencoder_forward.1} parent=1 // pred_fallthru
      _
    // Predicated region
    $region54: #{autoencoder_forward.1} parent=1 // pred_check
      _
    $region55: #{autoencoder_forward.1} parent=1 // pred_check_branch
      %127 = sbr.rel (0) target = $region57
    $region56: #{autoencoder_forward.1} parent=1 // pred_region
      %s129 = ssub.s32 4096, 4096
      %130 = vsyncadd [#allocation14], %s129
      %s131 = sshll.u32 [#allocation15], 4
      %s132 = int_to_ptr.vmem [resolvable:$true] %s131
      %137 = dma.hbm_to_vmem [thread:$0]  %s13, 4096, %s132, [#allocation14], 64, 64, 4
    $region57: #{autoencoder_forward.1} parent=1 // pred_fallthru
      _
    // Predicated region
    $region58: #{autoencoder_forward.1} parent=1 // pred_check
      _
    $region59: #{autoencoder_forward.1} parent=1 // pred_check_branch
      %139 = sbr.rel (0) target = $region61
    $region60: #{autoencoder_forward.1} parent=1 // pred_region
      %s141 = ssub.s32 16, 16
      %142 = vsyncadd [#allocation17], %s141
      %s144 = sshll.u32 [#allocation16], 4
      %s145 = int_to_ptr.vmem [resolvable:$true] %s144
      %147 = dma.hbm_to_vmem [thread:$0]  %s14, 16, %s145, [#allocation17]
    $region61: #{autoencoder_forward.1} parent=1 // pred_fallthru
      _
    // Predicated region
    $region62: #{autoencoder_forward.1} parent=1 // pred_check
      _
    $region63: #{autoencoder_forward.1} parent=1 // pred_check_branch
      %149 = sbr.rel (0) target = $region65
    $region64: #{autoencoder_forward.1} parent=1 // pred_region
      %150 = dma.done [#allocation3], 1024
    $region65: #{autoencoder_forward.1} parent=1 // pred_fallthru
      _
    // Predicated region
    $region66: #{autoencoder_forward.1} parent=1 // pred_check
      _
    $region67: #{autoencoder_forward.1} parent=1 // pred_check_branch
      %152 = sbr.rel (0) target = $region69
    $region68: #{autoencoder_forward.1} parent=1 // pred_region
      %153 = dma.done [#allocation5], 64
    $region69: #{autoencoder_forward.1} parent=1 // pred_fallthru
      _
    // Predicated region
    $region70: #{autoencoder_forward.1} parent=1 // pred_check
      _
    $region71: #{autoencoder_forward.1} parent=1 // pred_check_branch
      %155 = sbr.rel (0) target = $region73
    $region72: #{autoencoder_forward.1} parent=1 // pred_region
      %156 = dma.done [#allocation5], 8192
    $region73: #{autoencoder_forward.1} parent=1 // pred_fallthru
      _
    // Predicated region
    $region74: #{autoencoder_forward.1} parent=1 // pred_check
      _
    $region75: #{autoencoder_forward.1} parent=1 // pred_check_branch
      %158 = sbr.rel (0) target = $region77
    $region76: #{autoencoder_forward.1} parent=1 // pred_region
      %159 = dma.done [#allocation8], 2048
    $region77: #{autoencoder_forward.1} parent=1 // pred_fallthru
      _
    // Predicated region
    $region78: #{autoencoder_forward.1} parent=1 // pred_check
      _
    $region79: #{autoencoder_forward.1} parent=1 // pred_check_branch
      %161 = sbr.rel (0) target = $region81
    $region80: #{autoencoder_forward.1} parent=1 // pred_region
      %162 = dma.done [#allocation8], 2048
    $region81: #{autoencoder_forward.1} parent=1 // pred_fallthru
      _
    // Predicated region
    $region82: #{autoencoder_forward.1} parent=1 // pred_check
      _
    $region83: #{autoencoder_forward.1} parent=1 // pred_check_branch
      %164 = sbr.rel (0) target = $region85
    $region84: #{autoencoder_forward.1} parent=1 // pred_region
      %165 = dma.done [#allocation11], 32
    $region85: #{autoencoder_forward.1} parent=1 // pred_fallthru
      _
    // Predicated region
    $region86: #{autoencoder_forward.1} parent=1 // pred_check
      _
    $region87: #{autoencoder_forward.1} parent=1 // pred_check_branch
      %167 = sbr.rel (0) target = $region89
    $region88: #{autoencoder_forward.1} parent=1 // pred_region
      %168 = dma.done [#allocation11], 8192
    $region89: #{autoencoder_forward.1} parent=1 // pred_fallthru
      _
    // Predicated region
    $region90: #{autoencoder_forward.1} parent=1 // pred_check
      _
    $region91: #{autoencoder_forward.1} parent=1 // pred_check_branch
      %170 = sbr.rel (0) target = $region93
    $region92: #{autoencoder_forward.1} parent=1 // pred_region
      %171 = dma.done [#allocation14], 64
    $region93: #{autoencoder_forward.1} parent=1 // pred_fallthru
      _
    // Predicated region
    $region94: #{autoencoder_forward.1} parent=1 // pred_check
      _
    $region95: #{autoencoder_forward.1} parent=1 // pred_check_branch
      %173 = sbr.rel (0) target = $region97
    $region96: #{autoencoder_forward.1} parent=1 // pred_region
      %174 = dma.done [#allocation14], 4096
    $region97: #{autoencoder_forward.1} parent=1 // pred_fallthru
      _
    // Predicated region
    $region98: #{autoencoder_forward.1} parent=1 // pred_check
      _
    $region99: #{autoencoder_forward.1} parent=1 // pred_check_branch
      %176 = sbr.rel (0) target = $region101
    $region100: #{autoencoder_forward.1} parent=1 // pred_region
      %177 = dma.done [#allocation17], 16
    $region101: #{autoencoder_forward.1} parent=1 // pred_fallthru
      _
    %v179 = vld [vmem:[%s0] sm:$0xff]
    %v180 = vpack.c.bf16 %v179, %v179
    %v181 = vld [vmem:[#allocation2] sm:$0xff]
    %v182 = vld [vmem:[#allocation2 + $0x8] sm:$0xff]
    %v183 = vld [vmem:[#allocation2 + $0x10] sm:$0xff]
    %v184 = vld [vmem:[#allocation2 + $0x18] sm:$0xff]
    %v185 = vld [vmem:[#allocation2 + $0x20] sm:$0xff]
    %v186 = vld [vmem:[#allocation2 + $0x28] sm:$0xff]
    %v187 = vld [vmem:[#allocation2 + $0x30] sm:$0xff]
    %v188 = vld [vmem:[#allocation2 + $0x38] sm:$0xff]
    %v189 = vld [vmem:[#allocation4] sm:$0xf]
    %v191 = vlaneseq
    %v192 = vshrl.u32 %v191, 7
    %v193 = vsub.s32 0, %v192
    %v194 = vrot.slane %v189, %v193
    %v195 = vlaneseq
    %v196 = vshrl.u32 %v195, 7
    %v197 = vsub.s32 1, %v196
    %v198 = vrot.slane %v189, %v197
    %v199 = vlaneseq
    %v200 = vshrl.u32 %v199, 7
    %v201 = vsub.s32 2, %v200
    %v202 = vrot.slane %v189, %v201
    %v203 = vlaneseq
    %v204 = vshrl.u32 %v203, 7
    %v205 = vsub.s32 3, %v204
    %v206 = vrot.slane %v189, %v205
    %v219 = vunpack.c.l.b16 %v181
    %v220 = vunpack.c.h.b16 %v181
    %v221 = vunpack.c.l.b16 %v182
    %v222 = vunpack.c.h.b16 %v182
    %v223 = vunpack.c.l.b16 %v183
    %v224 = vunpack.c.h.b16 %v183
    %v225 = vunpack.c.l.b16 %v184
    %v226 = vunpack.c.h.b16 %v184
    %v227 = vunpack.c.l.b16 %v185
    %v228 = vunpack.c.h.b16 %v185
    %v229 = vunpack.c.l.b16 %v186
    %v230 = vunpack.c.h.b16 %v186
    %v231 = vunpack.c.l.b16 %v187
    %v232 = vunpack.c.h.b16 %v187
    %v233 = vunpack.c.l.b16 %v188
    %v234 = vunpack.c.h.b16 %v188
    %v235 = vpack.c.b16 %v223, %v219
    %v236 = vpack.c.b16 %v224, %v220
    %v237 = vpack.c.b16 %v225, %v221
    %v238 = vpack.c.b16 %v226, %v222
    %v239 = vpack.c.b16 %v231, %v227
    %v240 = vpack.c.b16 %v232, %v228
    %v241 = vpack.c.b16 %v233, %v229
    %v242 = vpack.c.b16 %v234, %v230
    %vm251 = vcmask 261120
    %v253 = vsel %vm251, %v180, 0
    %255 = vmatprep.subr.bf16.mxu0 %v236
    %256 = vmatpush1.bf16.msra.mxu0 %v235
    %257 = vmatprep.subr.bf16.mxu0 %v240
    %258 = vmatpush1.bf16.msra.mxu0 %v239
    %259 = vmatprep.subr.bf16.mxu0 0
    %260 = vmatpush1.bf16.msra.mxu0 0
    %261 = vmatprep.subr.bf16.mxu0 0
    %262 = vmatpush1.bf16.msra.mxu0 0
    %263 = vmatprep.subr.bf16.mxu0 0
    %264 = vmatpush1.bf16.msra.mxu0 0
    %265 = vmatprep.subr.bf16.mxu0 0
    %266 = vmatpush1.bf16.msra.mxu0 0
    %267 = vmatprep.subr.bf16.mxu0 0
    %268 = vmatpush1.bf16.msra.mxu0 0
    %269 = vmatprep.subr.bf16.mxu0 0
    %270 = vmatpush1.bf16.msra.mxu0 0
    %271 = vmatprep.subr.bf16.mxu0 0
    %272 = vmatpush1.bf16.msra.mxu0 0
    %273 = vmatprep.subr.bf16.mxu0 0
    %274 = vmatpush1.bf16.msra.mxu0 0
    %275 = vmatprep.subr.bf16.mxu0 0
    %276 = vmatpush1.bf16.msra.mxu0 0
    %277 = vmatprep.subr.bf16.mxu0 0
    %278 = vmatpush1.bf16.msra.mxu0 0
    %279 = vmatprep.subr.bf16.mxu0 0
    %280 = vmatpush1.bf16.msra.mxu0 0
    %281 = vmatprep.subr.bf16.mxu0 0
    %282 = vmatpush1.bf16.msra.mxu0 0
    %283 = vmatprep.subr.bf16.mxu0 0
    %284 = vmatpush1.bf16.msra.mxu0 0
    %285 = vmatprep.subr.bf16.mxu0 0
    %286 = vmatpush1.bf16.msra.mxu0 0
    %287 = vmatprep.mubr.bf16.mxu0 0
    %288 = vmatmul.mubr.bf16.gmra.mrb[0].mxu0 %v253
    %v289 = vpop.f32.mrb[0].mxu0
    %v290 = vadd.f32 %v194, %v289
    %v291 = vpop.f32.mrb[0].mxu0
    %v292 = vadd.f32 %v198, %v291
    %v293 = vpop.f32.mrb[0].mxu0
    %v294 = vpop.f32.mrb[0].mxu0
    %295 = vdwg.mxu0
    %296 = vmatprep.subr.bf16.mxu0 %v238
    %297 = vmatpush1.bf16.msra.mxu0 %v237
    %298 = vmatprep.subr.bf16.mxu0 %v242
    %299 = vmatpush1.bf16.msra.mxu0 %v241
    %300 = vmatprep.subr.bf16.mxu0 0
    %301 = vmatpush1.bf16.msra.mxu0 0
    %302 = vmatprep.subr.bf16.mxu0 0
    %303 = vmatpush1.bf16.msra.mxu0 0
    %304 = vmatprep.subr.bf16.mxu0 0
    %305 = vmatpush1.bf16.msra.mxu0 0
    %306 = vmatprep.subr.bf16.mxu0 0
    %307 = vmatpush1.bf16.msra.mxu0 0
    %308 = vmatprep.subr.bf16.mxu0 0
    %309 = vmatpush1.bf16.msra.mxu0 0
    %310 = vmatprep.subr.bf16.mxu0 0
    %311 = vmatpush1.bf16.msra.mxu0 0
    %312 = vmatprep.subr.bf16.mxu0 0
    %313 = vmatpush1.bf16.msra.mxu0 0
    %314 = vmatprep.subr.bf16.mxu0 0
    %315 = vmatpush1.bf16.msra.mxu0 0
    %316 = vmatprep.subr.bf16.mxu0 0
    %317 = vmatpush1.bf16.msra.mxu0 0
    %318 = vmatprep.subr.bf16.mxu0 0
    %319 = vmatpush1.bf16.msra.mxu0 0
    %320 = vmatprep.subr.bf16.mxu0 0
    %321 = vmatpush1.bf16.msra.mxu0 0
    %322 = vmatprep.subr.bf16.mxu0 0
    %323 = vmatpush1.bf16.msra.mxu0 0
    %324 = vmatprep.subr.bf16.mxu0 0
    %325 = vmatpush1.bf16.msra.mxu0 0
    %326 = vmatprep.subr.bf16.mxu0 0
    %327 = vmatpush1.bf16.msra.mxu0 0
    %328 = vmatprep.mubr.bf16.mxu0 0
    %329 = vmatmul.mubr.bf16.gmra.mrb[0].mxu0 %v253
    %v330 = vpop.f32.mrb[0].mxu0
    %v331 = vadd.f32 %v202, %v330
    %v332 = vpop.f32.mrb[0].mxu0
    %v333 = vadd.f32 %v206, %v332
    %v334 = vpop.f32.mrb[0].mxu0
    %v335 = vpop.f32.mrb[0].mxu0
    %336 = vdwg.mxu0
    %v337 = vmax.f32 %v290, 0.0
    %v338 = vmax.f32 %v292, 0.0
    %v339 = vmax.f32 %v331, 0.0
    %v340 = vmax.f32 %v333, 0.0
    %v341 = vpack.c.bf16 %v337, %v337
    %v342 = vpack.c.bf16 %v338, %v338
    %v343 = vpack.c.bf16 %v339, %v339
    %v344 = vpack.c.bf16 %v340, %v340
    %v345 = vld [vmem:[#allocation6] sm:$0xff]
    %v346 = vld [vmem:[#allocation6 + $0x8] sm:$0xff]
    %v347 = vld [vmem:[#allocation6 + $0x10] sm:$0xff]
    %v348 = vld [vmem:[#allocation6 + $0x18] sm:$0xff]
    %v349 = vld [vmem:[#allocation6 + $0x20] sm:$0xff]
    %v350 = vld [vmem:[#allocation6 + $0x28] sm:$0xff]
    %v351 = vld [vmem:[#allocation6 + $0x30] sm:$0xff]
    %v352 = vld [vmem:[#allocation6 + $0x38] sm:$0xff]
    %v353 = vld [vmem:[#allocation6 + $0x40] sm:$0xff]
    %v354 = vld [vmem:[#allocation6 + $0x48] sm:$0xff]
    %v355 = vld [vmem:[#allocation6 + $0x50] sm:$0xff]
    %v356 = vld [vmem:[#allocation6 + $0x58] sm:$0xff]
    %v357 = vld [vmem:[#allocation6 + $0x60] sm:$0xff]
    %v358 = vld [vmem:[#allocation6 + $0x68] sm:$0xff]
    %v359 = vld [vmem:[#allocation6 + $0x70] sm:$0xff]
    %v360 = vld [vmem:[#allocation6 + $0x78] sm:$0xff]
    %v361 = vld [vmem:[#allocation6 + $0x80] sm:$0xff]
    %v362 = vld [vmem:[#allocation6 + $0x88] sm:$0xff]
    %v363 = vld [vmem:[#allocation6 + $0x90] sm:$0xff]
    %v364 = vld [vmem:[#allocation6 + $0x98] sm:$0xff]
    %v365 = vld [vmem:[#allocation6 + $0xa0] sm:$0xff]
    %v366 = vld [vmem:[#allocation6 + $0xa8] sm:$0xff]
    %v367 = vld [vmem:[#allocation6 + $0xb0] sm:$0xff]
    %v368 = vld [vmem:[#allocation6 + $0xb8] sm:$0xff]
    %v369 = vld [vmem:[#allocation6 + $0xc0] sm:$0xff]
    %v370 = vld [vmem:[#allocation6 + $0xc8] sm:$0xff]
    %v371 = vld [vmem:[#allocation6 + $0xd0] sm:$0xff]
    %v372 = vld [vmem:[#allocation6 + $0xd8] sm:$0xff]
    %v373 = vld [vmem:[#allocation6 + $0xe0] sm:$0xff]
    %v374 = vld [vmem:[#allocation6 + $0xe8] sm:$0xff]
    %v375 = vld [vmem:[#allocation6 + $0xf0] sm:$0xff]
    %v376 = vld [vmem:[#allocation6 + $0xf8] sm:$0xff]
    %v377 = vld [vmem:[#allocation6 + $0x100] sm:$0xff]
    %v378 = vld [vmem:[#allocation6 + $0x108] sm:$0xff]
    %v379 = vld [vmem:[#allocation6 + $0x110] sm:$0xff]
    %v380 = vld [vmem:[#allocation6 + $0x118] sm:$0xff]
    %v381 = vld [vmem:[#allocation6 + $0x120] sm:$0xff]
    %v382 = vld [vmem:[#allocation6 + $0x128] sm:$0xff]
    %v383 = vld [vmem:[#allocation6 + $0x130] sm:$0xff]
    %v384 = vld [vmem:[#allocation6 + $0x138] sm:$0xff]
    %v385 = vld [vmem:[#allocation6 + $0x140] sm:$0xff]
    %v386 = vld [vmem:[#allocation6 + $0x148] sm:$0xff]
    %v387 = vld [vmem:[#allocation6 + $0x150] sm:$0xff]
    %v388 = vld [vmem:[#allocation6 + $0x158] sm:$0xff]
    %v389 = vld [vmem:[#allocation6 + $0x160] sm:$0xff]
    %v390 = vld [vmem:[#allocation6 + $0x168] sm:$0xff]
    %v391 = vld [vmem:[#allocation6 + $0x170] sm:$0xff]
    %v392 = vld [vmem:[#allocation6 + $0x178] sm:$0xff]
    %v393 = vld [vmem:[#allocation6 + $0x180] sm:$0xff]
    %v394 = vld [vmem:[#allocation6 + $0x188] sm:$0xff]
    %v395 = vld [vmem:[#allocation6 + $0x190] sm:$0xff]
    %v396 = vld [vmem:[#allocation6 + $0x198] sm:$0xff]
    %v397 = vld [vmem:[#allocation6 + $0x1a0] sm:$0xff]
    %v398 = vld [vmem:[#allocation6 + $0x1a8] sm:$0xff]
    %v399 = vld [vmem:[#allocation6 + $0x1b0] sm:$0xff]
    %v400 = vld [vmem:[#allocation6 + $0x1b8] sm:$0xff]
    %v401 = vld [vmem:[#allocation6 + $0x1c0] sm:$0xff]
    %v402 = vld [vmem:[#allocation6 + $0x1c8] sm:$0xff]
    %v403 = vld [vmem:[#allocation6 + $0x1d0] sm:$0xff]
    %v404 = vld [vmem:[#allocation6 + $0x1d8] sm:$0xff]
    %v405 = vld [vmem:[#allocation6 + $0x1e0] sm:$0xff]
    %v406 = vld [vmem:[#allocation6 + $0x1e8] sm:$0xff]
    %v407 = vld [vmem:[#allocation6 + $0x1f0] sm:$0xff]
    %v408 = vld [vmem:[#allocation6 + $0x1f8] sm:$0xff]
    %v409 = vld [vmem:[%s4] sm:$0x3]
    %v411 = vlaneseq
    %v412 = vshrl.u32 %v411, 7
    %v413 = vsub.s32 0, %v412
    %v414 = vrot.slane %v409, %v413
    %v415 = vlaneseq
    %v416 = vshrl.u32 %v415, 7
    %v417 = vsub.s32 1, %v416
    %v418 = vrot.slane %v409, %v417
    %v485 = vunpack.c.l.b16 %v345
    %v486 = vunpack.c.h.b16 %v345
    %v487 = vunpack.c.l.b16 %v346
    %v488 = vunpack.c.h.b16 %v346
    %v489 = vunpack.c.l.b16 %v347
    %v490 = vunpack.c.h.b16 %v347
    %v491 = vunpack.c.l.b16 %v348
    %v492 = vunpack.c.h.b16 %v348
    %v493 = vunpack.c.l.b16 %v349
    %v494 = vunpack.c.h.b16 %v349
    %v495 = vunpack.c.l.b16 %v350
    %v496 = vunpack.c.h.b16 %v350
    %v497 = vunpack.c.l.b16 %v351
    %v498 = vunpack.c.h.b16 %v351
    %v499 = vunpack.c.l.b16 %v352
    %v500 = vunpack.c.h.b16 %v352
    %v501 = vunpack.c.l.b16 %v353
    %v502 = vunpack.c.h.b16 %v353
    %v503 = vunpack.c.l.b16 %v354
    %v504 = vunpack.c.h.b16 %v354
    %v505 = vunpack.c.l.b16 %v355
    %v506 = vunpack.c.h.b16 %v355
    %v507 = vunpack.c.l.b16 %v356
    %v508 = vunpack.c.h.b16 %v356
    %v509 = vunpack.c.l.b16 %v357
    %v510 = vunpack.c.h.b16 %v357
    %v511 = vunpack.c.l.b16 %v358
    %v512 = vunpack.c.h.b16 %v358
    %v513 = vunpack.c.l.b16 %v359
    %v514 = vunpack.c.h.b16 %v359
    %v515 = vunpack.c.l.b16 %v360
    %v516 = vunpack.c.h.b16 %v360
    %v517 = vunpack.c.l.b16 %v361
    %v518 = vunpack.c.h.b16 %v361
    %v519 = vunpack.c.l.b16 %v362
    %v520 = vunpack.c.h.b16 %v362
    %v521 = vunpack.c.l.b16 %v363
    %v522 = vunpack.c.h.b16 %v363
    %v523 = vunpack.c.l.b16 %v364
    %v524 = vunpack.c.h.b16 %v364
    %v525 = vunpack.c.l.b16 %v365
    %v526 = vunpack.c.h.b16 %v365
    %v527 = vunpack.c.l.b16 %v366
    %v528 = vunpack.c.h.b16 %v366
    %v529 = vunpack.c.l.b16 %v367
    %v530 = vunpack.c.h.b16 %v367
    %v531 = vunpack.c.l.b16 %v368
    %v532 = vunpack.c.h.b16 %v368
    %v533 = vunpack.c.l.b16 %v369
    %v534 = vunpack.c.h.b16 %v369
    %v535 = vunpack.c.l.b16 %v370
    %v536 = vunpack.c.h.b16 %v370
    %v537 = vunpack.c.l.b16 %v371
    %v538 = vunpack.c.h.b16 %v371
    %v539 = vunpack.c.l.b16 %v372
    %v540 = vunpack.c.h.b16 %v372
    %v541 = vunpack.c.l.b16 %v373
    %v542 = vunpack.c.h.b16 %v373
    %v543 = vunpack.c.l.b16 %v374
    %v544 = vunpack.c.h.b16 %v374
    %v545 = vunpack.c.l.b16 %v375
    %v546 = vunpack.c.h.b16 %v375
    %v547 = vunpack.c.l.b16 %v376
    %v548 = vunpack.c.h.b16 %v376
    %v549 = vunpack.c.l.b16 %v377
    %v550 = vunpack.c.h.b16 %v377
    %v551 = vunpack.c.l.b16 %v378
    %v552 = vunpack.c.h.b16 %v378
    %v553 = vunpack.c.l.b16 %v379
    %v554 = vunpack.c.h.b16 %v379
    %v555 = vunpack.c.l.b16 %v380
    %v556 = vunpack.c.h.b16 %v380
    %v557 = vunpack.c.l.b16 %v381
    %v558 = vunpack.c.h.b16 %v381
    %v559 = vunpack.c.l.b16 %v382
    %v560 = vunpack.c.h.b16 %v382
    %v561 = vunpack.c.l.b16 %v383
    %v562 = vunpack.c.h.b16 %v383
    %v563 = vunpack.c.l.b16 %v384
    %v564 = vunpack.c.h.b16 %v384
    %v565 = vunpack.c.l.b16 %v385
    %v566 = vunpack.c.h.b16 %v385
    %v567 = vunpack.c.l.b16 %v386
    %v568 = vunpack.c.h.b16 %v386
    %v569 = vunpack.c.l.b16 %v387
    %v570 = vunpack.c.h.b16 %v387
    %v571 = vunpack.c.l.b16 %v388
    %v572 = vunpack.c.h.b16 %v388
    %v573 = vunpack.c.l.b16 %v389
    %v574 = vunpack.c.h.b16 %v389
    %v575 = vunpack.c.l.b16 %v390
    %v576 = vunpack.c.h.b16 %v390
    %v577 = vunpack.c.l.b16 %v391
    %v578 = vunpack.c.h.b16 %v391
    %v579 = vunpack.c.l.b16 %v392
    %v580 = vunpack.c.h.b16 %v392
    %v581 = vunpack.c.l.b16 %v393
    %v582 = vunpack.c.h.b16 %v393
    %v583 = vunpack.c.l.b16 %v394
    %v584 = vunpack.c.h.b16 %v394
    %v585 = vunpack.c.l.b16 %v395
    %v586 = vunpack.c.h.b16 %v395
    %v587 = vunpack.c.l.b16 %v396
    %v588 = vunpack.c.h.b16 %v396
    %v589 = vunpack.c.l.b16 %v397
    %v590 = vunpack.c.h.b16 %v397
    %v591 = vunpack.c.l.b16 %v398
    %v592 = vunpack.c.h.b16 %v398
    %v593 = vunpack.c.l.b16 %v399
    %v594 = vunpack.c.h.b16 %v399
    %v595 = vunpack.c.l.b16 %v400
    %v596 = vunpack.c.h.b16 %v400
    %v597 = vunpack.c.l.b16 %v401
    %v598 = vunpack.c.h.b16 %v401
    %v599 = vunpack.c.l.b16 %v402
    %v600 = vunpack.c.h.b16 %v402
    %v601 = vunpack.c.l.b16 %v403
    %v602 = vunpack.c.h.b16 %v403
    %v603 = vunpack.c.l.b16 %v404
    %v604 = vunpack.c.h.b16 %v404
    %v605 = vunpack.c.l.b16 %v405
    %v606 = vunpack.c.h.b16 %v405
    %v607 = vunpack.c.l.b16 %v406
    %v608 = vunpack.c.h.b16 %v406
    %v609 = vunpack.c.l.b16 %v407
    %v610 = vunpack.c.h.b16 %v407
    %v611 = vunpack.c.l.b16 %v408
    %v612 = vunpack.c.h.b16 %v408
    %v613 = vpack.c.b16 %v487, %v485
    %v614 = vpack.c.b16 %v488, %v486
    %v615 = vpack.c.b16 %v491, %v489
    %v616 = vpack.c.b16 %v492, %v490
    %v617 = vpack.c.b16 %v495, %v493
    %v618 = vpack.c.b16 %v496, %v494
    %v619 = vpack.c.b16 %v499, %v497
    %v620 = vpack.c.b16 %v500, %v498
    %v621 = vpack.c.b16 %v503, %v501
    %v622 = vpack.c.b16 %v504, %v502
    %v623 = vpack.c.b16 %v507, %v505
    %v624 = vpack.c.b16 %v508, %v506
    %v625 = vpack.c.b16 %v511, %v509
    %v626 = vpack.c.b16 %v512, %v510
    %v627 = vpack.c.b16 %v515, %v513
    %v628 = vpack.c.b16 %v516, %v514
    %v629 = vpack.c.b16 %v519, %v517
    %v630 = vpack.c.b16 %v520, %v518
    %v631 = vpack.c.b16 %v523, %v521
    %v632 = vpack.c.b16 %v524, %v522
    %v633 = vpack.c.b16 %v527, %v525
    %v634 = vpack.c.b16 %v528, %v526
    %v635 = vpack.c.b16 %v531, %v529
    %v636 = vpack.c.b16 %v532, %v530
    %v637 = vpack.c.b16 %v535, %v533
    %v638 = vpack.c.b16 %v536, %v534
    %v639 = vpack.c.b16 %v539, %v537
    %v640 = vpack.c.b16 %v540, %v538
    %v641 = vpack.c.b16 %v543, %v541
    %v642 = vpack.c.b16 %v544, %v542
    %v643 = vpack.c.b16 %v547, %v545
    %v644 = vpack.c.b16 %v548, %v546
    %v645 = vpack.c.b16 %v551, %v549
    %v646 = vpack.c.b16 %v552, %v550
    %v647 = vpack.c.b16 %v555, %v553
    %v648 = vpack.c.b16 %v556, %v554
    %v649 = vpack.c.b16 %v559, %v557
    %v650 = vpack.c.b16 %v560, %v558
    %v651 = vpack.c.b16 %v563, %v561
    %v652 = vpack.c.b16 %v564, %v562
    %v653 = vpack.c.b16 %v567, %v565
    %v654 = vpack.c.b16 %v568, %v566
    %v655 = vpack.c.b16 %v571, %v569
    %v656 = vpack.c.b16 %v572, %v570
    %v657 = vpack.c.b16 %v575, %v573
    %v658 = vpack.c.b16 %v576, %v574
    %v659 = vpack.c.b16 %v579, %v577
    %v660 = vpack.c.b16 %v580, %v578
    %v661 = vpack.c.b16 %v583, %v581
    %v662 = vpack.c.b16 %v584, %v582
    %v663 = vpack.c.b16 %v587, %v585
    %v664 = vpack.c.b16 %v588, %v586
    %v665 = vpack.c.b16 %v591, %v589
    %v666 = vpack.c.b16 %v592, %v590
    %v667 = vpack.c.b16 %v595, %v593
    %v668 = vpack.c.b16 %v596, %v594
    %v669 = vpack.c.b16 %v599, %v597
    %v670 = vpack.c.b16 %v600, %v598
    %v671 = vpack.c.b16 %v603, %v601
    %v672 = vpack.c.b16 %v604, %v602
    %v673 = vpack.c.b16 %v607, %v605
    %v674 = vpack.c.b16 %v608, %v606
    %v675 = vpack.c.b16 %v611, %v609
    %v676 = vpack.c.b16 %v612, %v610
    %741 = vmatprep.subr.bf16.mxu0 %v614
    %742 = vmatpush1.bf16.msra.mxu0 %v613
    %743 = vmatprep.subr.bf16.mxu0 %v616
    %744 = vmatpush1.bf16.msra.mxu0 %v615
    %745 = vmatprep.subr.bf16.mxu0 %v618
    %746 = vmatpush1.bf16.msra.mxu0 %v617
    %747 = vmatprep.subr.bf16.mxu0 %v620
    %748 = vmatpush1.bf16.msra.mxu0 %v619
    %749 = vmatprep.subr.bf16.mxu0 %v622
    %750 = vmatpush1.bf16.msra.mxu0 %v621
    %751 = vmatprep.subr.bf16.mxu0 %v624
    %752 = vmatpush1.bf16.msra.mxu0 %v623
    %753 = vmatprep.subr.bf16.mxu0 %v626
    %754 = vmatpush1.bf16.msra.mxu0 %v625
    %755 = vmatprep.subr.bf16.mxu0 %v628
    %756 = vmatpush1.bf16.msra.mxu0 %v627
    %757 = vmatprep.subr.bf16.mxu0 %v630
    %758 = vmatpush1.bf16.msra.mxu0 %v629
    %759 = vmatprep.subr.bf16.mxu0 %v632
    %760 = vmatpush1.bf16.msra.mxu0 %v631
    %761 = vmatprep.subr.bf16.mxu0 %v634
    %762 = vmatpush1.bf16.msra.mxu0 %v633
    %763 = vmatprep.subr.bf16.mxu0 %v636
    %764 = vmatpush1.bf16.msra.mxu0 %v635
    %765 = vmatprep.subr.bf16.mxu0 %v638
    %766 = vmatpush1.bf16.msra.mxu0 %v637
    %767 = vmatprep.subr.bf16.mxu0 %v640
    %768 = vmatpush1.bf16.msra.mxu0 %v639
    %769 = vmatprep.subr.bf16.mxu0 %v642
    %770 = vmatpush1.bf16.msra.mxu0 %v641
    %771 = vmatprep.subr.bf16.mxu0 %v644
    %772 = vmatpush1.bf16.msra.mxu0 %v643
    %773 = vmatprep.mubr.bf16.mxu0 %v342
    %774 = vmatmul.mubr.bf16.gmra.mrb[0].mxu0 %v341
    %v775 = vpop.f32.mrb[0].mxu0
    %v776 = vadd.f32 %v414, %v775
    %v777 = vpop.f32.mrb[0].mxu0
    %v778 = vadd.f32 %v418, %v777
    %v779 = vpop.f32.mrb[0].mxu0
    %v780 = vpop.f32.mrb[0].mxu0
    %781 = vdwg.mxu0
    %782 = vmatprep.subr.bf16.mxu0 %v646
    %783 = vmatpush1.bf16.msra.mxu0 %v645
    %784 = vmatprep.subr.bf16.mxu0 %v648
    %785 = vmatpush1.bf16.msra.mxu0 %v647
    %786 = vmatprep.subr.bf16.mxu0 %v650
    %787 = vmatpush1.bf16.msra.mxu0 %v649
    %788 = vmatprep.subr.bf16.mxu0 %v652
    %789 = vmatpush1.bf16.msra.mxu0 %v651
    %790 = vmatprep.subr.bf16.mxu0 %v654
    %791 = vmatpush1.bf16.msra.mxu0 %v653
    %792 = vmatprep.subr.bf16.mxu0 %v656
    %793 = vmatpush1.bf16.msra.mxu0 %v655
    %794 = vmatprep.subr.bf16.mxu0 %v658
    %795 = vmatpush1.bf16.msra.mxu0 %v657
    %796 = vmatprep.subr.bf16.mxu0 %v660
    %797 = vmatpush1.bf16.msra.mxu0 %v659
    %798 = vmatprep.subr.bf16.mxu0 %v662
    %799 = vmatpush1.bf16.msra.mxu0 %v661
    %800 = vmatprep.subr.bf16.mxu0 %v664
    %801 = vmatpush1.bf16.msra.mxu0 %v663
    %802 = vmatprep.subr.bf16.mxu0 %v666
    %803 = vmatpush1.bf16.msra.mxu0 %v665
    %804 = vmatprep.subr.bf16.mxu0 %v668
    %805 = vmatpush1.bf16.msra.mxu0 %v667
    %806 = vmatprep.subr.bf16.mxu0 %v670
    %807 = vmatpush1.bf16.msra.mxu0 %v669
    %808 = vmatprep.subr.bf16.mxu0 %v672
    %809 = vmatpush1.bf16.msra.mxu0 %v671
    %810 = vmatprep.subr.bf16.mxu0 %v674
    %811 = vmatpush1.bf16.msra.mxu0 %v673
    %812 = vmatprep.subr.bf16.mxu0 %v676
    %813 = vmatpush1.bf16.msra.mxu0 %v675
    %814 = vmatprep.mubr.bf16.mxu0 %v344
    %815 = vmatmul.mubr.bf16.gmra.mrb[0].mxu0 %v343
    %v816 = vpop.f32.mrb[0].mxu0
    %v817 = vadd.f32 %v776, %v816
    %v818 = vpop.f32.mrb[0].mxu0
    %v819 = vadd.f32 %v778, %v818
    %v820 = vpop.f32.mrb[0].mxu0
    %v821 = vpop.f32.mrb[0].mxu0
    %822 = vdwg.mxu0
    %v823 = vmax.f32 %v817, 0.0
    %v824 = vmax.f32 %v819, 0.0
    %v825 = vpack.c.bf16 %v823, %v823
    %v826 = vpack.c.bf16 %v824, %v824
    %v827 = vld [vmem:[#allocation7] sm:$0xf]
    %v828 = vld [vmem:[#allocation7 + $0x4] sm:$0xf]
    %v829 = vld [vmem:[#allocation7 + $0x8] sm:$0xf]
    %v830 = vld [vmem:[#allocation7 + $0xc] sm:$0xf]
    %v831 = vld [vmem:[#allocation7 + $0x10] sm:$0xf]
    %v832 = vld [vmem:[#allocation7 + $0x14] sm:$0xf]
    %v833 = vld [vmem:[#allocation7 + $0x18] sm:$0xf]
    %v834 = vld [vmem:[#allocation7 + $0x1c] sm:$0xf]
    %v835 = vld [vmem:[#allocation7 + $0x20] sm:$0xf]
    %v836 = vld [vmem:[#allocation7 + $0x24] sm:$0xf]
    %v837 = vld [vmem:[#allocation7 + $0x28] sm:$0xf]
    %v838 = vld [vmem:[#allocation7 + $0x2c] sm:$0xf]
    %v839 = vld [vmem:[#allocation7 + $0x30] sm:$0xf]
    %v840 = vld [vmem:[#allocation7 + $0x34] sm:$0xf]
    %v841 = vld [vmem:[#allocation7 + $0x38] sm:$0xf]
    %v842 = vld [vmem:[#allocation7 + $0x3c] sm:$0xf]
    %v843 = vld [vmem:[#allocation7 + $0x40] sm:$0xf]
    %v844 = vld [vmem:[#allocation7 + $0x44] sm:$0xf]
    %v845 = vld [vmem:[#allocation7 + $0x48] sm:$0xf]
    %v846 = vld [vmem:[#allocation7 + $0x4c] sm:$0xf]
    %v847 = vld [vmem:[#allocation7 + $0x50] sm:$0xf]
    %v848 = vld [vmem:[#allocation7 + $0x54] sm:$0xf]
    %v849 = vld [vmem:[#allocation7 + $0x58] sm:$0xf]
    %v850 = vld [vmem:[#allocation7 + $0x5c] sm:$0xf]
    %v851 = vld [vmem:[#allocation7 + $0x60] sm:$0xf]
    %v852 = vld [vmem:[#allocation7 + $0x64] sm:$0xf]
    %v853 = vld [vmem:[#allocation7 + $0x68] sm:$0xf]
    %v854 = vld [vmem:[#allocation7 + $0x6c] sm:$0xf]
    %v855 = vld [vmem:[#allocation7 + $0x70] sm:$0xf]
    %v856 = vld [vmem:[#allocation7 + $0x74] sm:$0xf]
    %v857 = vld [vmem:[#allocation7 + $0x78] sm:$0xf]
    %v858 = vld [vmem:[#allocation7 + $0x7c] sm:$0xf]
    %v859 = vld [vmem:[%s6] sm:$0x1]
    %v861 = vlaneseq
    %v862 = vshrl.u32 %v861, 7
    %v863 = vsub.s32 0, %v862
    %v864 = vrot.slane %v859, %v863
    %v898 = vunpack.c.l.b16 %v827
    %v899 = vunpack.c.l.b16 %v828
    %v900 = vunpack.c.l.b16 %v829
    %v901 = vunpack.c.l.b16 %v830
    %v902 = vunpack.c.l.b16 %v831
    %v903 = vunpack.c.l.b16 %v832
    %v904 = vunpack.c.l.b16 %v833
    %v905 = vunpack.c.l.b16 %v834
    %v906 = vunpack.c.l.b16 %v835
    %v907 = vunpack.c.l.b16 %v836
    %v908 = vunpack.c.l.b16 %v837
    %v909 = vunpack.c.l.b16 %v838
    %v910 = vunpack.c.l.b16 %v839
    %v911 = vunpack.c.l.b16 %v840
    %v912 = vunpack.c.l.b16 %v841
    %v913 = vunpack.c.l.b16 %v842
    %v914 = vunpack.c.l.b16 %v843
    %v915 = vunpack.c.l.b16 %v844
    %v916 = vunpack.c.l.b16 %v845
    %v917 = vunpack.c.l.b16 %v846
    %v918 = vunpack.c.l.b16 %v847
    %v919 = vunpack.c.l.b16 %v848
    %v920 = vunpack.c.l.b16 %v849
    %v921 = vunpack.c.l.b16 %v850
    %v922 = vunpack.c.l.b16 %v851
    %v923 = vunpack.c.l.b16 %v852
    %v924 = vunpack.c.l.b16 %v853
    %v925 = vunpack.c.l.b16 %v854
    %v926 = vunpack.c.l.b16 %v855
    %v927 = vunpack.c.l.b16 %v856
    %v928 = vunpack.c.l.b16 %v857
    %v929 = vunpack.c.l.b16 %v858
    %v930 = vpack.c.b16 %v899, %v898
    %v931 = vpack.c.b16 %v901, %v900
    %v932 = vpack.c.b16 %v903, %v902
    %v933 = vpack.c.b16 %v905, %v904
    %v934 = vpack.c.b16 %v907, %v906
    %v935 = vpack.c.b16 %v909, %v908
    %v936 = vpack.c.b16 %v911, %v910
    %v937 = vpack.c.b16 %v913, %v912
    %v938 = vpack.c.b16 %v915, %v914
    %v939 = vpack.c.b16 %v917, %v916
    %v940 = vpack.c.b16 %v919, %v918
    %v941 = vpack.c.b16 %v921, %v920
    %v942 = vpack.c.b16 %v923, %v922
    %v943 = vpack.c.b16 %v925, %v924
    %v944 = vpack.c.b16 %v927, %v926
    %v945 = vpack.c.b16 %v929, %v928
    %962 = vmatprep.subr.bf16.mxu0 0
    %963 = vmatpush1.bf16.msra.mxu0 %v930
    %964 = vmatprep.subr.bf16.mxu0 0
    %965 = vmatpush1.bf16.msra.mxu0 %v931
    %966 = vmatprep.subr.bf16.mxu0 0
    %967 = vmatpush1.bf16.msra.mxu0 %v932
    %968 = vmatprep.subr.bf16.mxu0 0
    %969 = vmatpush1.bf16.msra.mxu0 %v933
    %970 = vmatprep.subr.bf16.mxu0 0
    %971 = vmatpush1.bf16.msra.mxu0 %v934
    %972 = vmatprep.subr.bf16.mxu0 0
    %973 = vmatpush1.bf16.msra.mxu0 %v935
    %974 = vmatprep.subr.bf16.mxu0 0
    %975 = vmatpush1.bf16.msra.mxu0 %v936
    %976 = vmatprep.subr.bf16.mxu0 0
    %977 = vmatpush1.bf16.msra.mxu0 %v937
    %978 = vmatprep.subr.bf16.mxu0 0
    %979 = vmatpush1.bf16.msra.mxu0 %v938
    %980 = vmatprep.subr.bf16.mxu0 0
    %981 = vmatpush1.bf16.msra.mxu0 %v939
    %982 = vmatprep.subr.bf16.mxu0 0
    %983 = vmatpush1.bf16.msra.mxu0 %v940
    %984 = vmatprep.subr.bf16.mxu0 0
    %985 = vmatpush1.bf16.msra.mxu0 %v941
    %986 = vmatprep.subr.bf16.mxu0 0
    %987 = vmatpush1.bf16.msra.mxu0 %v942
    %988 = vmatprep.subr.bf16.mxu0 0
    %989 = vmatpush1.bf16.msra.mxu0 %v943
    %990 = vmatprep.subr.bf16.mxu0 0
    %991 = vmatpush1.bf16.msra.mxu0 %v944
    %992 = vmatprep.subr.bf16.mxu0 0
    %993 = vmatpush1.bf16.msra.mxu0 %v945
    %994 = vmatprep.mubr.bf16.mxu0 %v826
    %995 = vmatmul.mubr.bf16.gmra.mrb[0].mxu0 %v825
    %v996 = vpop.f32.mrb[0].mxu0
    %v997 = vadd.f32 %v864, %v996
    %v998 = vpop.f32.mrb[0].mxu0
    %v999 = vpop.f32.mrb[0].mxu0
    %v1000 = vpop.f32.mrb[0].mxu0
    %1001 = vdwg.mxu0
    %v1002 = vmax.f32 %v997, 0.0
    %v1003 = vpack.c.bf16 %v1002, %v1002
    %v1004 = vld [vmem:[%s7] sm:$0xf]
    %v1005 = vld [vmem:[%s7 + $0x4] sm:$0xf]
    %v1006 = vld [vmem:[%s7 + $0x8] sm:$0xf]
    %v1007 = vld [vmem:[%s7 + $0xc] sm:$0xf]
    %v1008 = vld [vmem:[%s7 + $0x10] sm:$0xf]
    %v1009 = vld [vmem:[%s7 + $0x14] sm:$0xf]
    %v1010 = vld [vmem:[%s7 + $0x18] sm:$0xf]
    %v1011 = vld [vmem:[%s7 + $0x1c] sm:$0xf]
    %v1012 = vld [vmem:[%s7 + $0x20] sm:$0xf]
    %v1013 = vld [vmem:[%s7 + $0x24] sm:$0xf]
    %v1014 = vld [vmem:[%s7 + $0x28] sm:$0xf]
    %v1015 = vld [vmem:[%s7 + $0x2c] sm:$0xf]
    %v1016 = vld [vmem:[%s7 + $0x30] sm:$0xf]
    %v1017 = vld [vmem:[%s7 + $0x34] sm:$0xf]
    %v1018 = vld [vmem:[%s7 + $0x38] sm:$0xf]
    %v1019 = vld [vmem:[%s7 + $0x3c] sm:$0xf]
    %v1020 = vld [vmem:[%s8] sm:$0x1]
    %v1022 = vlaneseq
    %v1023 = vshrl.u32 %v1022, 7
    %v1024 = vsub.s32 0, %v1023
    %v1025 = vrot.slane %v1020, %v1024
    %v1043 = vunpack.c.l.b16 %v1004
    %v1044 = vunpack.c.l.b16 %v1005
    %v1045 = vunpack.c.l.b16 %v1006
    %v1046 = vunpack.c.l.b16 %v1007
    %v1047 = vunpack.c.l.b16 %v1008
    %v1048 = vunpack.c.l.b16 %v1009
    %v1049 = vunpack.c.l.b16 %v1010
    %v1050 = vunpack.c.l.b16 %v1011
    %v1051 = vunpack.c.l.b16 %v1012
    %v1052 = vunpack.c.l.b16 %v1013
    %v1053 = vunpack.c.l.b16 %v1014
    %v1054 = vunpack.c.l.b16 %v1015
    %v1055 = vunpack.c.l.b16 %v1016
    %v1056 = vunpack.c.l.b16 %v1017
    %v1057 = vunpack.c.l.b16 %v1018
    %v1058 = vunpack.c.l.b16 %v1019
    %v1059 = vpack.c.b16 %v1044, %v1043
    %v1060 = vpack.c.b16 %v1046, %v1045
    %v1061 = vpack.c.b16 %v1048, %v1047
    %v1062 = vpack.c.b16 %v1050, %v1049
    %v1063 = vpack.c.b16 %v1052, %v1051
    %v1064 = vpack.c.b16 %v1054, %v1053
    %v1065 = vpack.c.b16 %v1056, %v1055
    %v1066 = vpack.c.b16 %v1058, %v1057
    %1075 = vmatprep.subr.bf16.mxu0 0
    %1076 = vmatpush1.bf16.msra.mxu0 %v1059
    %1077 = vmatprep.subr.bf16.mxu0 0
    %1078 = vmatpush1.bf16.msra.mxu0 %v1060
    %1079 = vmatprep.subr.bf16.mxu0 0
    %1080 = vmatpush1.bf16.msra.mxu0 %v1061
    %1081 = vmatprep.subr.bf16.mxu0 0
    %1082 = vmatpush1.bf16.msra.mxu0 %v1062
    %1083 = vmatprep.subr.bf16.mxu0 0
    %1084 = vmatpush1.bf16.msra.mxu0 %v1063
    %1085 = vmatprep.subr.bf16.mxu0 0
    %1086 = vmatpush1.bf16.msra.mxu0 %v1064
    %1087 = vmatprep.subr.bf16.mxu0 0
    %1088 = vmatpush1.bf16.msra.mxu0 %v1065
    %1089 = vmatprep.subr.bf16.mxu0 0
    %1090 = vmatpush1.bf16.msra.mxu0 %v1066
    %1091 = vmatprep.subr.bf16.mxu0 0
    %1092 = vmatpush1.bf16.msra.mxu0 0
    %1093 = vmatprep.subr.bf16.mxu0 0
    %1094 = vmatpush1.bf16.msra.mxu0 0
    %1095 = vmatprep.subr.bf16.mxu0 0
    %1096 = vmatpush1.bf16.msra.mxu0 0
    %1097 = vmatprep.subr.bf16.mxu0 0
    %1098 = vmatpush1.bf16.msra.mxu0 0
    %1099 = vmatprep.subr.bf16.mxu0 0
    %1100 = vmatpush1.bf16.msra.mxu0 0
    %1101 = vmatprep.subr.bf16.mxu0 0
    %1102 = vmatpush1.bf16.msra.mxu0 0
    %1103 = vmatprep.subr.bf16.mxu0 0
    %1104 = vmatpush1.bf16.msra.mxu0 0
    %1105 = vmatprep.subr.bf16.mxu0 0
    %1106 = vmatpush1.bf16.msra.mxu0 0
    %1107 = vmatprep.mubr.bf16.mxu0 0
    %1108 = vmatmul.mubr.bf16.gmra.mrb[0].mxu0 %v1003
    %v1109 = vpop.f32.mrb[0].mxu0
    %v1110 = vadd.f32 %v1025, %v1109
    %v1111 = vpop.f32.mrb[0].mxu0
    %v1112 = vpop.f32.mrb[0].mxu0
    %v1113 = vpop.f32.mrb[0].mxu0
    %1114 = vdwg.mxu0
    %v1115 = vmax.f32 %v1110, 0.0
    %v1116 = vpack.c.bf16 %v1115, %v1115
    %v1117 = vld [vmem:[#allocation9] sm:$0xff]
    %v1118 = vld [vmem:[#allocation9 + $0x8] sm:$0xff]
    %v1119 = vld [vmem:[#allocation9 + $0x10] sm:$0xff]
    %v1120 = vld [vmem:[#allocation9 + $0x18] sm:$0xff]
    %v1121 = vld [vmem:[#allocation9 + $0x20] sm:$0xff]
    %v1122 = vld [vmem:[#allocation9 + $0x28] sm:$0xff]
    %v1123 = vld [vmem:[#allocation9 + $0x30] sm:$0xff]
    %v1124 = vld [vmem:[#allocation9 + $0x38] sm:$0xff]
    %v1125 = vld [vmem:[#allocation9 + $0x40] sm:$0xff]
    %v1126 = vld [vmem:[#allocation9 + $0x48] sm:$0xff]
    %v1127 = vld [vmem:[#allocation9 + $0x50] sm:$0xff]
    %v1128 = vld [vmem:[#allocation9 + $0x58] sm:$0xff]
    %v1129 = vld [vmem:[#allocation9 + $0x60] sm:$0xff]
    %v1130 = vld [vmem:[#allocation9 + $0x68] sm:$0xff]
    %v1131 = vld [vmem:[#allocation9 + $0x70] sm:$0xff]
    %v1132 = vld [vmem:[#allocation9 + $0x78] sm:$0xff]
    %v1133 = vld [vmem:[#allocation10] sm:$0x3]
    %v1135 = vlaneseq
    %v1136 = vshrl.u32 %v1135, 7
    %v1137 = vsub.s32 0, %v1136
    %v1138 = vrot.slane %v1133, %v1137
    %v1139 = vlaneseq
    %v1140 = vshrl.u32 %v1139, 7
    %v1141 = vsub.s32 1, %v1140
    %v1142 = vrot.slane %v1133, %v1141
    %v1161 = vunpack.c.l.b16 %v1117
    %v1162 = vunpack.c.h.b16 %v1117
    %v1163 = vunpack.c.l.b16 %v1118
    %v1164 = vunpack.c.h.b16 %v1118
    %v1165 = vunpack.c.l.b16 %v1119
    %v1166 = vunpack.c.h.b16 %v1119
    %v1167 = vunpack.c.l.b16 %v1120
    %v1168 = vunpack.c.h.b16 %v1120
    %v1169 = vunpack.c.l.b16 %v1121
    %v1170 = vunpack.c.h.b16 %v1121
    %v1171 = vunpack.c.l.b16 %v1122
    %v1172 = vunpack.c.h.b16 %v1122
    %v1173 = vunpack.c.l.b16 %v1123
    %v1174 = vunpack.c.h.b16 %v1123
    %v1175 = vunpack.c.l.b16 %v1124
    %v1176 = vunpack.c.h.b16 %v1124
    %v1177 = vunpack.c.l.b16 %v1125
    %v1178 = vunpack.c.h.b16 %v1125
    %v1179 = vunpack.c.l.b16 %v1126
    %v1180 = vunpack.c.h.b16 %v1126
    %v1181 = vunpack.c.l.b16 %v1127
    %v1182 = vunpack.c.h.b16 %v1127
    %v1183 = vunpack.c.l.b16 %v1128
    %v1184 = vunpack.c.h.b16 %v1128
    %v1185 = vunpack.c.l.b16 %v1129
    %v1186 = vunpack.c.h.b16 %v1129
    %v1187 = vunpack.c.l.b16 %v1130
    %v1188 = vunpack.c.h.b16 %v1130
    %v1189 = vunpack.c.l.b16 %v1131
    %v1190 = vunpack.c.h.b16 %v1131
    %v1191 = vunpack.c.l.b16 %v1132
    %v1192 = vunpack.c.h.b16 %v1132
    %v1193 = vpack.c.b16 %v1163, %v1161
    %v1194 = vpack.c.b16 %v1164, %v1162
    %v1195 = vpack.c.b16 %v1167, %v1165
    %v1196 = vpack.c.b16 %v1168, %v1166
    %v1197 = vpack.c.b16 %v1171, %v1169
    %v1198 = vpack.c.b16 %v1172, %v1170
    %v1199 = vpack.c.b16 %v1175, %v1173
    %v1200 = vpack.c.b16 %v1176, %v1174
    %v1201 = vpack.c.b16 %v1179, %v1177
    %v1202 = vpack.c.b16 %v1180, %v1178
    %v1203 = vpack.c.b16 %v1183, %v1181
    %v1204 = vpack.c.b16 %v1184, %v1182
    %v1205 = vpack.c.b16 %v1187, %v1185
    %v1206 = vpack.c.b16 %v1188, %v1186
    %v1207 = vpack.c.b16 %v1191, %v1189
    %v1208 = vpack.c.b16 %v1192, %v1190
    %1225 = vmatprep.subr.bf16.mxu0 %v1194
    %1226 = vmatpush1.bf16.msra.mxu0 %v1193
    %1227 = vmatprep.subr.bf16.mxu0 %v1196
    %1228 = vmatpush1.bf16.msra.mxu0 %v1195
    %1229 = vmatprep.subr.bf16.mxu0 %v1198
    %1230 = vmatpush1.bf16.msra.mxu0 %v1197
    %1231 = vmatprep.subr.bf16.mxu0 %v1200
    %1232 = vmatpush1.bf16.msra.mxu0 %v1199
    %1233 = vmatprep.subr.bf16.mxu0 %v1202
    %1234 = vmatpush1.bf16.msra.mxu0 %v1201
    %1235 = vmatprep.subr.bf16.mxu0 %v1204
    %1236 = vmatpush1.bf16.msra.mxu0 %v1203
    %1237 = vmatprep.subr.bf16.mxu0 %v1206
    %1238 = vmatpush1.bf16.msra.mxu0 %v1205
    %1239 = vmatprep.subr.bf16.mxu0 %v1208
    %1240 = vmatpush1.bf16.msra.mxu0 %v1207
    %1241 = vmatprep.subr.bf16.mxu0 0
    %1242 = vmatpush1.bf16.msra.mxu0 0
    %1243 = vmatprep.subr.bf16.mxu0 0
    %1244 = vmatpush1.bf16.msra.mxu0 0
    %1245 = vmatprep.subr.bf16.mxu0 0
    %1246 = vmatpush1.bf16.msra.mxu0 0
    %1247 = vmatprep.subr.bf16.mxu0 0
    %1248 = vmatpush1.bf16.msra.mxu0 0
    %1249 = vmatprep.subr.bf16.mxu0 0
    %1250 = vmatpush1.bf16.msra.mxu0 0
    %1251 = vmatprep.subr.bf16.mxu0 0
    %1252 = vmatpush1.bf16.msra.mxu0 0
    %1253 = vmatprep.subr.bf16.mxu0 0
    %1254 = vmatpush1.bf16.msra.mxu0 0
    %1255 = vmatprep.subr.bf16.mxu0 0
    %1256 = vmatpush1.bf16.msra.mxu0 0
    %1257 = vmatprep.mubr.bf16.mxu0 0
    %1258 = vmatmul.mubr.bf16.gmra.mrb[0].mxu0 %v1116
    %v1259 = vpop.f32.mrb[0].mxu0
    %v1260 = vadd.f32 %v1138, %v1259
    %v1261 = vpop.f32.mrb[0].mxu0
    %v1262 = vadd.f32 %v1142, %v1261
    %v1263 = vpop.f32.mrb[0].mxu0
    %v1264 = vpop.f32.mrb[0].mxu0
    %1265 = vdwg.mxu0
    %v1266 = vmax.f32 %v1260, 0.0
    %v1267 = vmax.f32 %v1262, 0.0
    %v1268 = vpack.c.bf16 %v1266, %v1266
    %v1269 = vpack.c.bf16 %v1267, %v1267
    %v1270 = vld [vmem:[#allocation12] sm:$0xff]
    %v1271 = vld [vmem:[#allocation12 + $0x8] sm:$0xff]
    %v1272 = vld [vmem:[#allocation12 + $0x10] sm:$0xff]
    %v1273 = vld [vmem:[#allocation12 + $0x18] sm:$0xff]
    %v1274 = vld [vmem:[#allocation12 + $0x20] sm:$0xff]
    %v1275 = vld [vmem:[#allocation12 + $0x28] sm:$0xff]
    %v1276 = vld [vmem:[#allocation12 + $0x30] sm:$0xff]
    %v1277 = vld [vmem:[#allocation12 + $0x38] sm:$0xff]
    %v1278 = vld [vmem:[#allocation12 + $0x40] sm:$0xff]
    %v1279 = vld [vmem:[#allocation12 + $0x48] sm:$0xff]
    %v1280 = vld [vmem:[#allocation12 + $0x50] sm:$0xff]
    %v1281 = vld [vmem:[#allocation12 + $0x58] sm:$0xff]
    %v1282 = vld [vmem:[#allocation12 + $0x60] sm:$0xff]
    %v1283 = vld [vmem:[#allocation12 + $0x68] sm:$0xff]
    %v1284 = vld [vmem:[#allocation12 + $0x70] sm:$0xff]
    %v1285 = vld [vmem:[#allocation12 + $0x78] sm:$0xff]
    %v1286 = vld [vmem:[#allocation12 + $0x80] sm:$0xff]
    %v1287 = vld [vmem:[#allocation12 + $0x88] sm:$0xff]
    %v1288 = vld [vmem:[#allocation12 + $0x90] sm:$0xff]
    %v1289 = vld [vmem:[#allocation12 + $0x98] sm:$0xff]
    %v1290 = vld [vmem:[#allocation12 + $0xa0] sm:$0xff]
    %v1291 = vld [vmem:[#allocation12 + $0xa8] sm:$0xff]
    %v1292 = vld [vmem:[#allocation12 + $0xb0] sm:$0xff]
    %v1293 = vld [vmem:[#allocation12 + $0xb8] sm:$0xff]
    %v1294 = vld [vmem:[#allocation12 + $0xc0] sm:$0xff]
    %v1295 = vld [vmem:[#allocation12 + $0xc8] sm:$0xff]
    %v1296 = vld [vmem:[#allocation12 + $0xd0] sm:$0xff]
    %v1297 = vld [vmem:[#allocation12 + $0xd8] sm:$0xff]
    %v1298 = vld [vmem:[#allocation12 + $0xe0] sm:$0xff]
    %v1299 = vld [vmem:[#allocation12 + $0xe8] sm:$0xff]
    %v1300 = vld [vmem:[#allocation12 + $0xf0] sm:$0xff]
    %v1301 = vld [vmem:[#allocation12 + $0xf8] sm:$0xff]
    %v1302 = vld [vmem:[#allocation12 + $0x100] sm:$0xff]
    %v1303 = vld [vmem:[#allocation12 + $0x108] sm:$0xff]
    %v1304 = vld [vmem:[#allocation12 + $0x110] sm:$0xff]
    %v1305 = vld [vmem:[#allocation12 + $0x118] sm:$0xff]
    %v1306 = vld [vmem:[#allocation12 + $0x120] sm:$0xff]
    %v1307 = vld [vmem:[#allocation12 + $0x128] sm:$0xff]
    %v1308 = vld [vmem:[#allocation12 + $0x130] sm:$0xff]
    %v1309 = vld [vmem:[#allocation12 + $0x138] sm:$0xff]
    %v1310 = vld [vmem:[#allocation12 + $0x140] sm:$0xff]
    %v1311 = vld [vmem:[#allocation12 + $0x148] sm:$0xff]
    %v1312 = vld [vmem:[#allocation12 + $0x150] sm:$0xff]
    %v1313 = vld [vmem:[#allocation12 + $0x158] sm:$0xff]
    %v1314 = vld [vmem:[#allocation12 + $0x160] sm:$0xff]
    %v1315 = vld [vmem:[#allocation12 + $0x168] sm:$0xff]
    %v1316 = vld [vmem:[#allocation12 + $0x170] sm:$0xff]
    %v1317 = vld [vmem:[#allocation12 + $0x178] sm:$0xff]
    %v1318 = vld [vmem:[#allocation12 + $0x180] sm:$0xff]
    %v1319 = vld [vmem:[#allocation12 + $0x188] sm:$0xff]
    %v1320 = vld [vmem:[#allocation12 + $0x190] sm:$0xff]
    %v1321 = vld [vmem:[#allocation12 + $0x198] sm:$0xff]
    %v1322 = vld [vmem:[#allocation12 + $0x1a0] sm:$0xff]
    %v1323 = vld [vmem:[#allocation12 + $0x1a8] sm:$0xff]
    %v1324 = vld [vmem:[#allocation12 + $0x1b0] sm:$0xff]
    %v1325 = vld [vmem:[#allocation12 + $0x1b8] sm:$0xff]
    %v1326 = vld [vmem:[#allocation12 + $0x1c0] sm:$0xff]
    %v1327 = vld [vmem:[#allocation12 + $0x1c8] sm:$0xff]
    %v1328 = vld [vmem:[#allocation12 + $0x1d0] sm:$0xff]
    %v1329 = vld [vmem:[#allocation12 + $0x1d8] sm:$0xff]
    %v1330 = vld [vmem:[#allocation12 + $0x1e0] sm:$0xff]
    %v1331 = vld [vmem:[#allocation12 + $0x1e8] sm:$0xff]
    %v1332 = vld [vmem:[#allocation12 + $0x1f0] sm:$0xff]
    %v1333 = vld [vmem:[#allocation12 + $0x1f8] sm:$0xff]
    %v1334 = vld [vmem:[#allocation13] sm:$0xf]
    %v1336 = vlaneseq
    %v1337 = vshrl.u32 %v1336, 7
    %v1338 = vsub.s32 0, %v1337
    %v1339 = vrot.slane %v1334, %v1338
    %v1340 = vlaneseq
    %v1341 = vshrl.u32 %v1340, 7
    %v1342 = vsub.s32 1, %v1341
    %v1343 = vrot.slane %v1334, %v1342
    %v1344 = vlaneseq
    %v1345 = vshrl.u32 %v1344, 7
    %v1346 = vsub.s32 2, %v1345
    %v1347 = vrot.slane %v1334, %v1346
    %v1348 = vlaneseq
    %v1349 = vshrl.u32 %v1348, 7
    %v1350 = vsub.s32 3, %v1349
    %v1351 = vrot.slane %v1334, %v1350
    %v1420 = vunpack.c.l.b16 %v1270
    %v1421 = vunpack.c.h.b16 %v1270
    %v1422 = vunpack.c.l.b16 %v1271
    %v1423 = vunpack.c.h.b16 %v1271
    %v1424 = vunpack.c.l.b16 %v1272
    %v1425 = vunpack.c.h.b16 %v1272
    %v1426 = vunpack.c.l.b16 %v1273
    %v1427 = vunpack.c.h.b16 %v1273
    %v1428 = vunpack.c.l.b16 %v1274
    %v1429 = vunpack.c.h.b16 %v1274
    %v1430 = vunpack.c.l.b16 %v1275
    %v1431 = vunpack.c.h.b16 %v1275
    %v1432 = vunpack.c.l.b16 %v1276
    %v1433 = vunpack.c.h.b16 %v1276
    %v1434 = vunpack.c.l.b16 %v1277
    %v1435 = vunpack.c.h.b16 %v1277
    %v1436 = vunpack.c.l.b16 %v1278
    %v1437 = vunpack.c.h.b16 %v1278
    %v1438 = vunpack.c.l.b16 %v1279
    %v1439 = vunpack.c.h.b16 %v1279
    %v1440 = vunpack.c.l.b16 %v1280
    %v1441 = vunpack.c.h.b16 %v1280
    %v1442 = vunpack.c.l.b16 %v1281
    %v1443 = vunpack.c.h.b16 %v1281
    %v1444 = vunpack.c.l.b16 %v1282
    %v1445 = vunpack.c.h.b16 %v1282
    %v1446 = vunpack.c.l.b16 %v1283
    %v1447 = vunpack.c.h.b16 %v1283
    %v1448 = vunpack.c.l.b16 %v1284
    %v1449 = vunpack.c.h.b16 %v1284
    %v1450 = vunpack.c.l.b16 %v1285
    %v1451 = vunpack.c.h.b16 %v1285
    %v1452 = vunpack.c.l.b16 %v1286
    %v1453 = vunpack.c.h.b16 %v1286
    %v1454 = vunpack.c.l.b16 %v1287
    %v1455 = vunpack.c.h.b16 %v1287
    %v1456 = vunpack.c.l.b16 %v1288
    %v1457 = vunpack.c.h.b16 %v1288
    %v1458 = vunpack.c.l.b16 %v1289
    %v1459 = vunpack.c.h.b16 %v1289
    %v1460 = vunpack.c.l.b16 %v1290
    %v1461 = vunpack.c.h.b16 %v1290
    %v1462 = vunpack.c.l.b16 %v1291
    %v1463 = vunpack.c.h.b16 %v1291
    %v1464 = vunpack.c.l.b16 %v1292
    %v1465 = vunpack.c.h.b16 %v1292
    %v1466 = vunpack.c.l.b16 %v1293
    %v1467 = vunpack.c.h.b16 %v1293
    %v1468 = vunpack.c.l.b16 %v1294
    %v1469 = vunpack.c.h.b16 %v1294
    %v1470 = vunpack.c.l.b16 %v1295
    %v1471 = vunpack.c.h.b16 %v1295
    %v1472 = vunpack.c.l.b16 %v1296
    %v1473 = vunpack.c.h.b16 %v1296
    %v1474 = vunpack.c.l.b16 %v1297
    %v1475 = vunpack.c.h.b16 %v1297
    %v1476 = vunpack.c.l.b16 %v1298
    %v1477 = vunpack.c.h.b16 %v1298
    %v1478 = vunpack.c.l.b16 %v1299
    %v1479 = vunpack.c.h.b16 %v1299
    %v1480 = vunpack.c.l.b16 %v1300
    %v1481 = vunpack.c.h.b16 %v1300
    %v1482 = vunpack.c.l.b16 %v1301
    %v1483 = vunpack.c.h.b16 %v1301
    %v1484 = vunpack.c.l.b16 %v1302
    %v1485 = vunpack.c.h.b16 %v1302
    %v1486 = vunpack.c.l.b16 %v1303
    %v1487 = vunpack.c.h.b16 %v1303
    %v1488 = vunpack.c.l.b16 %v1304
    %v1489 = vunpack.c.h.b16 %v1304
    %v1490 = vunpack.c.l.b16 %v1305
    %v1491 = vunpack.c.h.b16 %v1305
    %v1492 = vunpack.c.l.b16 %v1306
    %v1493 = vunpack.c.h.b16 %v1306
    %v1494 = vunpack.c.l.b16 %v1307
    %v1495 = vunpack.c.h.b16 %v1307
    %v1496 = vunpack.c.l.b16 %v1308
    %v1497 = vunpack.c.h.b16 %v1308
    %v1498 = vunpack.c.l.b16 %v1309
    %v1499 = vunpack.c.h.b16 %v1309
    %v1500 = vunpack.c.l.b16 %v1310
    %v1501 = vunpack.c.h.b16 %v1310
    %v1502 = vunpack.c.l.b16 %v1311
    %v1503 = vunpack.c.h.b16 %v1311
    %v1504 = vunpack.c.l.b16 %v1312
    %v1505 = vunpack.c.h.b16 %v1312
    %v1506 = vunpack.c.l.b16 %v1313
    %v1507 = vunpack.c.h.b16 %v1313
    %v1508 = vunpack.c.l.b16 %v1314
    %v1509 = vunpack.c.h.b16 %v1314
    %v1510 = vunpack.c.l.b16 %v1315
    %v1511 = vunpack.c.h.b16 %v1315
    %v1512 = vunpack.c.l.b16 %v1316
    %v1513 = vunpack.c.h.b16 %v1316
    %v1514 = vunpack.c.l.b16 %v1317
    %v1515 = vunpack.c.h.b16 %v1317
    %v1516 = vunpack.c.l.b16 %v1318
    %v1517 = vunpack.c.h.b16 %v1318
    %v1518 = vunpack.c.l.b16 %v1319
    %v1519 = vunpack.c.h.b16 %v1319
    %v1520 = vunpack.c.l.b16 %v1320
    %v1521 = vunpack.c.h.b16 %v1320
    %v1522 = vunpack.c.l.b16 %v1321
    %v1523 = vunpack.c.h.b16 %v1321
    %v1524 = vunpack.c.l.b16 %v1322
    %v1525 = vunpack.c.h.b16 %v1322
    %v1526 = vunpack.c.l.b16 %v1323
    %v1527 = vunpack.c.h.b16 %v1323
    %v1528 = vunpack.c.l.b16 %v1324
    %v1529 = vunpack.c.h.b16 %v1324
    %v1530 = vunpack.c.l.b16 %v1325
    %v1531 = vunpack.c.h.b16 %v1325
    %v1532 = vunpack.c.l.b16 %v1326
    %v1533 = vunpack.c.h.b16 %v1326
    %v1534 = vunpack.c.l.b16 %v1327
    %v1535 = vunpack.c.h.b16 %v1327
    %v1536 = vunpack.c.l.b16 %v1328
    %v1537 = vunpack.c.h.b16 %v1328
    %v1538 = vunpack.c.l.b16 %v1329
    %v1539 = vunpack.c.h.b16 %v1329
    %v1540 = vunpack.c.l.b16 %v1330
    %v1541 = vunpack.c.h.b16 %v1330
    %v1542 = vunpack.c.l.b16 %v1331
    %v1543 = vunpack.c.h.b16 %v1331
    %v1544 = vunpack.c.l.b16 %v1332
    %v1545 = vunpack.c.h.b16 %v1332
    %v1546 = vunpack.c.l.b16 %v1333
    %v1547 = vunpack.c.h.b16 %v1333
    %v1548 = vpack.c.b16 %v1424, %v1420
    %v1549 = vpack.c.b16 %v1425, %v1421
    %v1550 = vpack.c.b16 %v1426, %v1422
    %v1551 = vpack.c.b16 %v1427, %v1423
    %v1552 = vpack.c.b16 %v1432, %v1428
    %v1553 = vpack.c.b16 %v1433, %v1429
    %v1554 = vpack.c.b16 %v1434, %v1430
    %v1555 = vpack.c.b16 %v1435, %v1431
    %v1556 = vpack.c.b16 %v1440, %v1436
    %v1557 = vpack.c.b16 %v1441, %v1437
    %v1558 = vpack.c.b16 %v1442, %v1438
    %v1559 = vpack.c.b16 %v1443, %v1439
    %v1560 = vpack.c.b16 %v1448, %v1444
    %v1561 = vpack.c.b16 %v1449, %v1445
    %v1562 = vpack.c.b16 %v1450, %v1446
    %v1563 = vpack.c.b16 %v1451, %v1447
    %v1564 = vpack.c.b16 %v1456, %v1452
    %v1565 = vpack.c.b16 %v1457, %v1453
    %v1566 = vpack.c.b16 %v1458, %v1454
    %v1567 = vpack.c.b16 %v1459, %v1455
    %v1568 = vpack.c.b16 %v1464, %v1460
    %v1569 = vpack.c.b16 %v1465, %v1461
    %v1570 = vpack.c.b16 %v1466, %v1462
    %v1571 = vpack.c.b16 %v1467, %v1463
    %v1572 = vpack.c.b16 %v1472, %v1468
    %v1573 = vpack.c.b16 %v1473, %v1469
    %v1574 = vpack.c.b16 %v1474, %v1470
    %v1575 = vpack.c.b16 %v1475, %v1471
    %v1576 = vpack.c.b16 %v1480, %v1476
    %v1577 = vpack.c.b16 %v1481, %v1477
    %v1578 = vpack.c.b16 %v1482, %v1478
    %v1579 = vpack.c.b16 %v1483, %v1479
    %v1580 = vpack.c.b16 %v1488, %v1484
    %v1581 = vpack.c.b16 %v1489, %v1485
    %v1582 = vpack.c.b16 %v1490, %v1486
    %v1583 = vpack.c.b16 %v1491, %v1487
    %v1584 = vpack.c.b16 %v1496, %v1492
    %v1585 = vpack.c.b16 %v1497, %v1493
    %v1586 = vpack.c.b16 %v1498, %v1494
    %v1587 = vpack.c.b16 %v1499, %v1495
    %v1588 = vpack.c.b16 %v1504, %v1500
    %v1589 = vpack.c.b16 %v1505, %v1501
    %v1590 = vpack.c.b16 %v1506, %v1502
    %v1591 = vpack.c.b16 %v1507, %v1503
    %v1592 = vpack.c.b16 %v1512, %v1508
    %v1593 = vpack.c.b16 %v1513, %v1509
    %v1594 = vpack.c.b16 %v1514, %v1510
    %v1595 = vpack.c.b16 %v1515, %v1511
    %v1596 = vpack.c.b16 %v1520, %v1516
    %v1597 = vpack.c.b16 %v1521, %v1517
    %v1598 = vpack.c.b16 %v1522, %v1518
    %v1599 = vpack.c.b16 %v1523, %v1519
    %v1600 = vpack.c.b16 %v1528, %v1524
    %v1601 = vpack.c.b16 %v1529, %v1525
    %v1602 = vpack.c.b16 %v1530, %v1526
    %v1603 = vpack.c.b16 %v1531, %v1527
    %v1604 = vpack.c.b16 %v1536, %v1532
    %v1605 = vpack.c.b16 %v1537, %v1533
    %v1606 = vpack.c.b16 %v1538, %v1534
    %v1607 = vpack.c.b16 %v1539, %v1535
    %v1608 = vpack.c.b16 %v1544, %v1540
    %v1609 = vpack.c.b16 %v1545, %v1541
    %v1610 = vpack.c.b16 %v1546, %v1542
    %v1611 = vpack.c.b16 %v1547, %v1543
    %1676 = vmatprep.subr.bf16.mxu0 %v1549
    %1677 = vmatpush1.bf16.msra.mxu0 %v1548
    %1678 = vmatprep.subr.bf16.mxu0 %v1553
    %1679 = vmatpush1.bf16.msra.mxu0 %v1552
    %1680 = vmatprep.subr.bf16.mxu0 %v1557
    %1681 = vmatpush1.bf16.msra.mxu0 %v1556
    %1682 = vmatprep.subr.bf16.mxu0 %v1561
    %1683 = vmatpush1.bf16.msra.mxu0 %v1560
    %1684 = vmatprep.subr.bf16.mxu0 %v1565
    %1685 = vmatpush1.bf16.msra.mxu0 %v1564
    %1686 = vmatprep.subr.bf16.mxu0 %v1569
    %1687 = vmatpush1.bf16.msra.mxu0 %v1568
    %1688 = vmatprep.subr.bf16.mxu0 %v1573
    %1689 = vmatpush1.bf16.msra.mxu0 %v1572
    %1690 = vmatprep.subr.bf16.mxu0 %v1577
    %1691 = vmatpush1.bf16.msra.mxu0 %v1576
    %1692 = vmatprep.subr.bf16.mxu0 %v1581
    %1693 = vmatpush1.bf16.msra.mxu0 %v1580
    %1694 = vmatprep.subr.bf16.mxu0 %v1585
    %1695 = vmatpush1.bf16.msra.mxu0 %v1584
    %1696 = vmatprep.subr.bf16.mxu0 %v1589
    %1697 = vmatpush1.bf16.msra.mxu0 %v1588
    %1698 = vmatprep.subr.bf16.mxu0 %v1593
    %1699 = vmatpush1.bf16.msra.mxu0 %v1592
    %1700 = vmatprep.subr.bf16.mxu0 %v1597
    %1701 = vmatpush1.bf16.msra.mxu0 %v1596
    %1702 = vmatprep.subr.bf16.mxu0 %v1601
    %1703 = vmatpush1.bf16.msra.mxu0 %v1600
    %1704 = vmatprep.subr.bf16.mxu0 %v1605
    %1705 = vmatpush1.bf16.msra.mxu0 %v1604
    %1706 = vmatprep.subr.bf16.mxu0 %v1609
    %1707 = vmatpush1.bf16.msra.mxu0 %v1608
    %1708 = vmatprep.mubr.bf16.mxu0 %v1269
    %1709 = vmatmul.mubr.bf16.gmra.mrb[0].mxu0 %v1268
    %v1710 = vpop.f32.mrb[0].mxu0
    %v1711 = vadd.f32 %v1339, %v1710
    %v1712 = vpop.f32.mrb[0].mxu0
    %v1713 = vadd.f32 %v1343, %v1712
    %v1714 = vpop.f32.mrb[0].mxu0
    %v1715 = vpop.f32.mrb[0].mxu0
    %1716 = vdwg.mxu0
    %1717 = vmatprep.subr.bf16.mxu0 %v1551
    %1718 = vmatpush1.bf16.msra.mxu0 %v1550
    %1719 = vmatprep.subr.bf16.mxu0 %v1555
    %1720 = vmatpush1.bf16.msra.mxu0 %v1554
    %1721 = vmatprep.subr.bf16.mxu0 %v1559
    %1722 = vmatpush1.bf16.msra.mxu0 %v1558
    %1723 = vmatprep.subr.bf16.mxu0 %v1563
    %1724 = vmatpush1.bf16.msra.mxu0 %v1562
    %1725 = vmatprep.subr.bf16.mxu0 %v1567
    %1726 = vmatpush1.bf16.msra.mxu0 %v1566
    %1727 = vmatprep.subr.bf16.mxu0 %v1571
    %1728 = vmatpush1.bf16.msra.mxu0 %v1570
    %1729 = vmatprep.subr.bf16.mxu0 %v1575
    %1730 = vmatpush1.bf16.msra.mxu0 %v1574
    %1731 = vmatprep.subr.bf16.mxu0 %v1579
    %1732 = vmatpush1.bf16.msra.mxu0 %v1578
    %1733 = vmatprep.subr.bf16.mxu0 %v1583
    %1734 = vmatpush1.bf16.msra.mxu0 %v1582
    %1735 = vmatprep.subr.bf16.mxu0 %v1587
    %1736 = vmatpush1.bf16.msra.mxu0 %v1586
    %1737 = vmatprep.subr.bf16.mxu0 %v1591
    %1738 = vmatpush1.bf16.msra.mxu0 %v1590
    %1739 = vmatprep.subr.bf16.mxu0 %v1595
    %1740 = vmatpush1.bf16.msra.mxu0 %v1594
    %1741 = vmatprep.subr.bf16.mxu0 %v1599
    %1742 = vmatpush1.bf16.msra.mxu0 %v1598
    %1743 = vmatprep.subr.bf16.mxu0 %v1603
    %1744 = vmatpush1.bf16.msra.mxu0 %v1602
    %1745 = vmatprep.subr.bf16.mxu0 %v1607
    %1746 = vmatpush1.bf16.msra.mxu0 %v1606
    %1747 = vmatprep.subr.bf16.mxu0 %v1611
    %1748 = vmatpush1.bf16.msra.mxu0 %v1610
    %1749 = vmatprep.mubr.bf16.mxu0 %v1269
    %1750 = vmatmul.mubr.bf16.gmra.mrb[0].mxu0 %v1268
    %v1751 = vpop.f32.mrb[0].mxu0
    %v1752 = vadd.f32 %v1347, %v1751
    %v1753 = vpop.f32.mrb[0].mxu0
    %v1754 = vadd.f32 %v1351, %v1753
    %v1755 = vpop.f32.mrb[0].mxu0
    %v1756 = vpop.f32.mrb[0].mxu0
    %1757 = vdwg.mxu0
    %v1758 = vmax.f32 %v1711, 0.0
    %v1759 = vmax.f32 %v1713, 0.0
    %v1760 = vmax.f32 %v1752, 0.0
    %v1761 = vmax.f32 %v1754, 0.0
    %v1762 = vpack.c.bf16 %v1758, %v1758
    %v1763 = vpack.c.bf16 %v1759, %v1759
    %v1764 = vpack.c.bf16 %v1760, %v1760
    %v1765 = vpack.c.bf16 %v1761, %v1761
    %v1766 = vld [vmem:[#allocation15] sm:$0xf]
    %v1767 = vld [vmem:[#allocation15 + $0x4] sm:$0xf]
    %v1768 = vld [vmem:[#allocation15 + $0x8] sm:$0xf]
    %v1769 = vld [vmem:[#allocation15 + $0xc] sm:$0xf]
    %v1770 = vld [vmem:[#allocation15 + $0x10] sm:$0xf]
    %v1771 = vld [vmem:[#allocation15 + $0x14] sm:$0xf]
    %v1772 = vld [vmem:[#allocation15 + $0x18] sm:$0xf]
    %v1773 = vld [vmem:[#allocation15 + $0x1c] sm:$0xf]
    %v1774 = vld [vmem:[#allocation15 + $0x20] sm:$0xf]
    %v1775 = vld [vmem:[#allocation15 + $0x24] sm:$0xf]
    %v1776 = vld [vmem:[#allocation15 + $0x28] sm:$0xf]
    %v1777 = vld [vmem:[#allocation15 + $0x2c] sm:$0xf]
    %v1778 = vld [vmem:[#allocation15 + $0x30] sm:$0xf]
    %v1779 = vld [vmem:[#allocation15 + $0x34] sm:$0xf]
    %v1780 = vld [vmem:[#allocation15 + $0x38] sm:$0xf]
    %v1781 = vld [vmem:[#allocation15 + $0x3c] sm:$0xf]
    %v1782 = vld [vmem:[#allocation15 + $0x40] sm:$0xf]
    %v1783 = vld [vmem:[#allocation15 + $0x44] sm:$0xf]
    %v1784 = vld [vmem:[#allocation15 + $0x48] sm:$0xf]
    %v1785 = vld [vmem:[#allocation15 + $0x4c] sm:$0xf]
    %v1786 = vld [vmem:[#allocation15 + $0x50] sm:$0xf]
    %v1787 = vld [vmem:[#allocation15 + $0x54] sm:$0xf]
    %v1788 = vld [vmem:[#allocation15 + $0x58] sm:$0xf]
    %v1789 = vld [vmem:[#allocation15 + $0x5c] sm:$0xf]
    %v1790 = vld [vmem:[#allocation15 + $0x60] sm:$0xf]
    %v1791 = vld [vmem:[#allocation15 + $0x64] sm:$0xf]
    %v1792 = vld [vmem:[#allocation15 + $0x68] sm:$0xf]
    %v1793 = vld [vmem:[#allocation15 + $0x6c] sm:$0xf]
    %v1794 = vld [vmem:[#allocation15 + $0x70] sm:$0xf]
    %v1795 = vld [vmem:[#allocation15 + $0x74] sm:$0xf]
    %v1796 = vld [vmem:[#allocation15 + $0x78] sm:$0xf]
    %v1797 = vld [vmem:[#allocation15 + $0x7c] sm:$0xf]
    %v1798 = vld [vmem:[#allocation15 + $0x80] sm:$0xf]
    %v1799 = vld [vmem:[#allocation15 + $0x84] sm:$0xf]
    %v1800 = vld [vmem:[#allocation15 + $0x88] sm:$0xf]
    %v1801 = vld [vmem:[#allocation15 + $0x8c] sm:$0xf]
    %v1802 = vld [vmem:[#allocation15 + $0x90] sm:$0xf]
    %v1803 = vld [vmem:[#allocation15 + $0x94] sm:$0xf]
    %v1804 = vld [vmem:[#allocation15 + $0x98] sm:$0xf]
    %v1805 = vld [vmem:[#allocation15 + $0x9c] sm:$0xf]
    %v1806 = vld [vmem:[#allocation15 + $0xa0] sm:$0xf]
    %v1807 = vld [vmem:[#allocation15 + $0xa4] sm:$0xf]
    %v1808 = vld [vmem:[#allocation15 + $0xa8] sm:$0xf]
    %v1809 = vld [vmem:[#allocation15 + $0xac] sm:$0xf]
    %v1810 = vld [vmem:[#allocation15 + $0xb0] sm:$0xf]
    %v1811 = vld [vmem:[#allocation15 + $0xb4] sm:$0xf]
    %v1812 = vld [vmem:[#allocation15 + $0xb8] sm:$0xf]
    %v1813 = vld [vmem:[#allocation15 + $0xbc] sm:$0xf]
    %v1814 = vld [vmem:[#allocation15 + $0xc0] sm:$0xf]
    %v1815 = vld [vmem:[#allocation15 + $0xc4] sm:$0xf]
    %v1816 = vld [vmem:[#allocation15 + $0xc8] sm:$0xf]
    %v1817 = vld [vmem:[#allocation15 + $0xcc] sm:$0xf]
    %v1818 = vld [vmem:[#allocation15 + $0xd0] sm:$0xf]
    %v1819 = vld [vmem:[#allocation15 + $0xd4] sm:$0xf]
    %v1820 = vld [vmem:[#allocation15 + $0xd8] sm:$0xf]
    %v1821 = vld [vmem:[#allocation15 + $0xdc] sm:$0xf]
    %v1822 = vld [vmem:[#allocation15 + $0xe0] sm:$0xf]
    %v1823 = vld [vmem:[#allocation15 + $0xe4] sm:$0xf]
    %v1824 = vld [vmem:[#allocation15 + $0xe8] sm:$0xf]
    %v1825 = vld [vmem:[#allocation15 + $0xec] sm:$0xf]
    %v1826 = vld [vmem:[#allocation15 + $0xf0] sm:$0xf]
    %v1827 = vld [vmem:[#allocation15 + $0xf4] sm:$0xf]
    %v1828 = vld [vmem:[#allocation15 + $0xf8] sm:$0xf]
    %v1829 = vld [vmem:[#allocation15 + $0xfc] sm:$0xf]
    %v1830 = vld [vmem:[#allocation16] sm:$0x1]
    %v1832 = vlaneseq
    %v1833 = vshrl.u32 %v1832, 7
    %v1834 = vsub.s32 0, %v1833
    %v1835 = vrot.slane %v1830, %v1834
    %v1901 = vunpack.c.l.b16 %v1766
    %v1902 = vunpack.c.l.b16 %v1767
    %v1903 = vunpack.c.l.b16 %v1768
    %v1904 = vunpack.c.l.b16 %v1769
    %v1905 = vunpack.c.l.b16 %v1770
    %v1906 = vunpack.c.l.b16 %v1771
    %v1907 = vunpack.c.l.b16 %v1772
    %v1908 = vunpack.c.l.b16 %v1773
    %v1909 = vunpack.c.l.b16 %v1774
    %v1910 = vunpack.c.l.b16 %v1775
    %v1911 = vunpack.c.l.b16 %v1776
    %v1912 = vunpack.c.l.b16 %v1777
    %v1913 = vunpack.c.l.b16 %v1778
    %v1914 = vunpack.c.l.b16 %v1779
    %v1915 = vunpack.c.l.b16 %v1780
    %v1916 = vunpack.c.l.b16 %v1781
    %v1917 = vunpack.c.l.b16 %v1782
    %v1918 = vunpack.c.l.b16 %v1783
    %v1919 = vunpack.c.l.b16 %v1784
    %v1920 = vunpack.c.l.b16 %v1785
    %v1921 = vunpack.c.l.b16 %v1786
    %v1922 = vunpack.c.l.b16 %v1787
    %v1923 = vunpack.c.l.b16 %v1788
    %v1924 = vunpack.c.l.b16 %v1789
    %v1925 = vunpack.c.l.b16 %v1790
    %v1926 = vunpack.c.l.b16 %v1791
    %v1927 = vunpack.c.l.b16 %v1792
    %v1928 = vunpack.c.l.b16 %v1793
    %v1929 = vunpack.c.l.b16 %v1794
    %v1930 = vunpack.c.l.b16 %v1795
    %v1931 = vunpack.c.l.b16 %v1796
    %v1932 = vunpack.c.l.b16 %v1797
    %v1933 = vunpack.c.l.b16 %v1798
    %v1934 = vunpack.c.l.b16 %v1799
    %v1935 = vunpack.c.l.b16 %v1800
    %v1936 = vunpack.c.l.b16 %v1801
    %v1937 = vunpack.c.l.b16 %v1802
    %v1938 = vunpack.c.l.b16 %v1803
    %v1939 = vunpack.c.l.b16 %v1804
    %v1940 = vunpack.c.l.b16 %v1805
    %v1941 = vunpack.c.l.b16 %v1806
    %v1942 = vunpack.c.l.b16 %v1807
    %v1943 = vunpack.c.l.b16 %v1808
    %v1944 = vunpack.c.l.b16 %v1809
    %v1945 = vunpack.c.l.b16 %v1810
    %v1946 = vunpack.c.l.b16 %v1811
    %v1947 = vunpack.c.l.b16 %v1812
    %v1948 = vunpack.c.l.b16 %v1813
    %v1949 = vunpack.c.l.b16 %v1814
    %v1950 = vunpack.c.l.b16 %v1815
    %v1951 = vunpack.c.l.b16 %v1816
    %v1952 = vunpack.c.l.b16 %v1817
    %v1953 = vunpack.c.l.b16 %v1818
    %v1954 = vunpack.c.l.b16 %v1819
    %v1955 = vunpack.c.l.b16 %v1820
    %v1956 = vunpack.c.l.b16 %v1821
    %v1957 = vunpack.c.l.b16 %v1822
    %v1958 = vunpack.c.l.b16 %v1823
    %v1959 = vunpack.c.l.b16 %v1824
    %v1960 = vunpack.c.l.b16 %v1825
    %v1961 = vunpack.c.l.b16 %v1826
    %v1962 = vunpack.c.l.b16 %v1827
    %v1963 = vunpack.c.l.b16 %v1828
    %v1964 = vunpack.c.l.b16 %v1829
    %v1965 = vpack.c.b16 %v1902, %v1901
    %v1966 = vpack.c.b16 %v1904, %v1903
    %v1967 = vpack.c.b16 %v1906, %v1905
    %v1968 = vpack.c.b16 %v1908, %v1907
    %v1969 = vpack.c.b16 %v1910, %v1909
    %v1970 = vpack.c.b16 %v1912, %v1911
    %v1971 = vpack.c.b16 %v1914, %v1913
    %v1972 = vpack.c.b16 %v1916, %v1915
    %v1973 = vpack.c.b16 %v1918, %v1917
    %v1974 = vpack.c.b16 %v1920, %v1919
    %v1975 = vpack.c.b16 %v1922, %v1921
    %v1976 = vpack.c.b16 %v1924, %v1923
    %v1977 = vpack.c.b16 %v1926, %v1925
    %v1978 = vpack.c.b16 %v1928, %v1927
    %v1979 = vpack.c.b16 %v1930, %v1929
    %v1980 = vpack.c.b16 %v1932, %v1931
    %v1981 = vpack.c.b16 %v1934, %v1933
    %v1982 = vpack.c.b16 %v1936, %v1935
    %v1983 = vpack.c.b16 %v1938, %v1937
    %v1984 = vpack.c.b16 %v1940, %v1939
    %v1985 = vpack.c.b16 %v1942, %v1941
    %v1986 = vpack.c.b16 %v1944, %v1943
    %v1987 = vpack.c.b16 %v1946, %v1945
    %v1988 = vpack.c.b16 %v1948, %v1947
    %v1989 = vpack.c.b16 %v1950, %v1949
    %v1990 = vpack.c.b16 %v1952, %v1951
    %v1991 = vpack.c.b16 %v1954, %v1953
    %v1992 = vpack.c.b16 %v1956, %v1955
    %v1993 = vpack.c.b16 %v1958, %v1957
    %v1994 = vpack.c.b16 %v1960, %v1959
    %v1995 = vpack.c.b16 %v1962, %v1961
    %v1996 = vpack.c.b16 %v1964, %v1963
    %2029 = vmatprep.subr.bf16.mxu0 0
    %2030 = vmatpush1.bf16.msra.mxu0 %v1965
    %2031 = vmatprep.subr.bf16.mxu0 0
    %2032 = vmatpush1.bf16.msra.mxu0 %v1966
    %2033 = vmatprep.subr.bf16.mxu0 0
    %2034 = vmatpush1.bf16.msra.mxu0 %v1967
    %2035 = vmatprep.subr.bf16.mxu0 0
    %2036 = vmatpush1.bf16.msra.mxu0 %v1968
    %2037 = vmatprep.subr.bf16.mxu0 0
    %2038 = vmatpush1.bf16.msra.mxu0 %v1969
    %2039 = vmatprep.subr.bf16.mxu0 0
    %2040 = vmatpush1.bf16.msra.mxu0 %v1970
    %2041 = vmatprep.subr.bf16.mxu0 0
    %2042 = vmatpush1.bf16.msra.mxu0 %v1971
    %2043 = vmatprep.subr.bf16.mxu0 0
    %2044 = vmatpush1.bf16.msra.mxu0 %v1972
    %2045 = vmatprep.subr.bf16.mxu0 0
    %2046 = vmatpush1.bf16.msra.mxu0 %v1973
    %2047 = vmatprep.subr.bf16.mxu0 0
    %2048 = vmatpush1.bf16.msra.mxu0 %v1974
    %2049 = vmatprep.subr.bf16.mxu0 0
    %2050 = vmatpush1.bf16.msra.mxu0 %v1975
    %2051 = vmatprep.subr.bf16.mxu0 0
    %2052 = vmatpush1.bf16.msra.mxu0 %v1976
    %2053 = vmatprep.subr.bf16.mxu0 0
    %2054 = vmatpush1.bf16.msra.mxu0 %v1977
    %2055 = vmatprep.subr.bf16.mxu0 0
    %2056 = vmatpush1.bf16.msra.mxu0 %v1978
    %2057 = vmatprep.subr.bf16.mxu0 0
    %2058 = vmatpush1.bf16.msra.mxu0 %v1979
    %2059 = vmatprep.subr.bf16.mxu0 0
    %2060 = vmatpush1.bf16.msra.mxu0 %v1980
    %2061 = vmatprep.mubr.bf16.mxu0 %v1763
    %2062 = vmatmul.mubr.bf16.gmra.mrb[0].mxu0 %v1762
    %v2063 = vpop.f32.mrb[0].mxu0
    %v2064 = vadd.f32 %v1835, %v2063
    %v2065 = vpop.f32.mrb[0].mxu0
    %v2066 = vpop.f32.mrb[0].mxu0
    %v2067 = vpop.f32.mrb[0].mxu0
    %2068 = vdwg.mxu0
    %2069 = vmatprep.subr.bf16.mxu0 0
    %2070 = vmatpush1.bf16.msra.mxu0 %v1981
    %2071 = vmatprep.subr.bf16.mxu0 0
    %2072 = vmatpush1.bf16.msra.mxu0 %v1982
    %2073 = vmatprep.subr.bf16.mxu0 0
    %2074 = vmatpush1.bf16.msra.mxu0 %v1983
    %2075 = vmatprep.subr.bf16.mxu0 0
    %2076 = vmatpush1.bf16.msra.mxu0 %v1984
    %2077 = vmatprep.subr.bf16.mxu0 0
    %2078 = vmatpush1.bf16.msra.mxu0 %v1985
    %2079 = vmatprep.subr.bf16.mxu0 0
    %2080 = vmatpush1.bf16.msra.mxu0 %v1986
    %2081 = vmatprep.subr.bf16.mxu0 0
    %2082 = vmatpush1.bf16.msra.mxu0 %v1987
    %2083 = vmatprep.subr.bf16.mxu0 0
    %2084 = vmatpush1.bf16.msra.mxu0 %v1988
    %2085 = vmatprep.subr.bf16.mxu0 0
    %2086 = vmatpush1.bf16.msra.mxu0 %v1989
    %2087 = vmatprep.subr.bf16.mxu0 0
    %2088 = vmatpush1.bf16.msra.mxu0 %v1990
    %2089 = vmatprep.subr.bf16.mxu0 0
    %2090 = vmatpush1.bf16.msra.mxu0 %v1991
    %2091 = vmatprep.subr.bf16.mxu0 0
    %2092 = vmatpush1.bf16.msra.mxu0 %v1992
    %2093 = vmatprep.subr.bf16.mxu0 0
    %2094 = vmatpush1.bf16.msra.mxu0 %v1993
    %2095 = vmatprep.subr.bf16.mxu0 0
    %2096 = vmatpush1.bf16.msra.mxu0 %v1994
    %2097 = vmatprep.subr.bf16.mxu0 0
    %2098 = vmatpush1.bf16.msra.mxu0 %v1995
    %2099 = vmatprep.subr.bf16.mxu0 0
    %2100 = vmatpush1.bf16.msra.mxu0 %v1996
    %2101 = vmatprep.mubr.bf16.mxu0 %v1765
    %2102 = vmatmul.mubr.bf16.gmra.mrb[0].mxu0 %v1764
    %v2103 = vpop.f32.mrb[0].mxu0
    %v2104 = vadd.f32 %v2064, %v2103
    %v2105 = vpop.f32.mrb[0].mxu0
    %v2106 = vpop.f32.mrb[0].mxu0
    %v2107 = vpop.f32.mrb[0].mxu0
    %2108 = vdwg.mxu0
    %2109 = vst [vmem:[%s15] sm:$0xff] %v2104
    // Predicated region
    $region102: #{autoencoder_forward.1} parent=1 // pred_check
      _
    $region103: #{autoencoder_forward.1} parent=1 // pred_check_branch
      %2111 = sbr.rel (0) target = $region105
    $region104: #{autoencoder_forward.1} parent=1 // pred_region
      _
    $region105: #{autoencoder_forward.1} parent=1 // pred_fallthru
      _
    // Predicated region
    $region106: #{autoencoder_forward.1} parent=1 // pred_check
      _
    $region107: #{autoencoder_forward.1} parent=1 // pred_check_branch
      %2113 = sbr.rel (0) target = $region109
    $region108: #{autoencoder_forward.1} parent=1 // pred_region
      _
    $region109: #{autoencoder_forward.1} parent=1 // pred_fallthru
      _
    %2114 = vsyncpa [#allocation3], 1
    %2115 = vsyncpa [#allocation5], 1
    %2116 = vsyncpa [#allocation8], 1
    %2117 = vsyncpa [#allocation11], 1
    %2118 = vsyncpa [#allocation14], 1
    %2119 = vsyncpa [#allocation17], 1

</llo_original>
